<compile_context>
chip_gen: v7x
topology: tpu7x:2x2x1
jax: 0.10.0
libtpu: 0.0.40
codegen_flags: <defaults>
</compile_context>

<pallas_src>
import math

import jax
import jax.numpy as jnp
from jax.experimental import pallas as pl
from jax.experimental.pallas import tpu as pltpu

# ----- model hyper-parameters (small, consistent with the module) -----
BATCH = 2
SEQ = 8
DIM = 32
NUM_HEADS = 4
HEAD_DIM = DIM // NUM_HEADS
MLP_HIDDEN = int(DIM * 4.0)          # 128
B_BLK = 1                            # batch elements per grid step (grid = B // B_BLK = 2)
EPS = 1e-5                           # nn.LayerNorm default eps


def _layernorm(x, w, b):
    mu = jnp.mean(x, axis=-1, keepdims=True)
    var = jnp.mean((x - mu) ** 2, axis=-1, keepdims=True)
    return (x - mu) * jax.lax.rsqrt(var + EPS) * w + b


def _gelu_exact(x):
    # nn.GELU default is the exact erf formulation.
    return 0.5 * x * (1.0 + jax.lax.erf(x * (1.0 / math.sqrt(2.0))))


def block_kernel(x_ref, consts_ref, wqkv_ref, wo_ref, w1_ref, w2_ref, o_ref, attn_sc):
    # x_ref: (B_BLK, SEQ, C) f32 — one batch block per grid step.
    bb, seq, c = x_ref.shape
    rows = bb * seq
    x = x_ref[...].reshape(rows, c).astype(jnp.float32)       # (rows, C)

    # Stacked small constants, padded to (8, 128); load the whole slab once.
    cst = consts_ref[...]                                     # (8, 128) f32
    ln1w = cst[0:1, 0:DIM]
    ln1b = cst[1:2, 0:DIM]
    bo   = cst[2:3, 0:DIM]
    ln2w = cst[3:4, 0:DIM]
    ln2b = cst[4:5, 0:DIM]
    b2   = cst[5:6, 0:DIM]
    b1   = cst[6:7, :]                                        # (1, MLP_HIDDEN)

    # ---------------- attention branch ----------------
    xn = _layernorm(x, ln1w, ln1b)                            # (rows, C) f32

    # Fused Q/K/V projection (scale pre-folded into the Q columns of wqkv).
    qkv = jnp.dot(xn.astype(jnp.bfloat16), wqkv_ref[...],
                  preferred_element_type=jnp.float32)         # (rows, 3C) f32
    q3 = qkv[:, 0 * DIM:1 * DIM].reshape(bb, seq, DIM)
    k3 = qkv[:, 1 * DIM:2 * DIM].reshape(bb, seq, DIM)
    v3 = qkv[:, 2 * DIM:3 * DIM].reshape(bb, seq, DIM)

    # Static head loop (no transposes); each head's output lands in its lane
    # slice of the VMEM scratch, then one matmul applies the full output proj.
    for h in range(NUM_HEADS):
        sl = slice(h * HEAD_DIM, (h + 1) * HEAD_DIM)
        qh = q3[:, :, sl].astype(jnp.bfloat16)                # (bb, N, hd)
        kh = k3[:, :, sl].astype(jnp.bfloat16)
        vh = v3[:, :, sl].astype(jnp.bfloat16)

        s = jnp.einsum("bnd,bmd->bnm", qh, kh,
                       preferred_element_type=jnp.float32)    # (bb, N, N) (already scaled)
        # No max-subtraction: exp(s)/sum(exp(s)) is identical; scores are tiny.
        p = jnp.exp(s)
        p = p * pl.reciprocal(jnp.sum(p, axis=-1, keepdims=True), approx=True)

        oh = jnp.einsum("bnm,bmd->bnd", p.astype(jnp.bfloat16), vh,
                        preferred_element_type=jnp.float32)   # (bb, N, hd)
        attn_sc[:, sl] = oh.reshape(rows, HEAD_DIM)

    attn_proj = jnp.dot(attn_sc[...].astype(jnp.bfloat16), wo_ref[...],
                        preferred_element_type=jnp.float32)   # one (rows,C)x(C,C) matmul

    x = x + attn_proj + bo                                    # first residual (+ proj bias)

    # ---------------- MLP branch ----------------
    xn2 = _layernorm(x, ln2w, ln2b)
    h1 = jnp.dot(xn2.astype(jnp.bfloat16), w1_ref[...],
                 preferred_element_type=jnp.float32) + b1     # (rows, MLP_HIDDEN)
    h1 = _gelu_exact(h1)
    h2 = jnp.dot(h1.astype(jnp.bfloat16), w2_ref[...],
                 preferred_element_type=jnp.float32) + b2     # (rows, C)

    o_ref[...] = (x + h2).reshape(bb, seq, c).astype(o_ref.dtype)   # second residual


def vit_block(x, params):
    """x: (B, N, C) float32. params: PyTorch-convention weights."""
    B, N, C = x.shape
    assert B % B_BLK == 0
    rows = B_BLK * N
    scale = HEAD_DIM ** (-0.5)

    # Weight prep (glue): pre-transpose to (in, out), fuse QKV (scale folded
    # into the Q columns), cast MXU weights to bf16.
    wqkv = jnp.concatenate(
        [params["wq"].T * scale, params["wk"].T, params["wv"].T],
        axis=1).astype(jnp.bfloat16)                          # (C, 3C)
    wo = params["wo"].T.astype(jnp.bfloat16)                  # (C, C)
    w1 = params["w1"].T.astype(jnp.bfloat16)                  # (C, MLP_HIDDEN)
    w2 = params["w2"].T.astype(jnp.bfloat16)                  # (MLP_HIDDEN, C)

    # Stack the six small vectors (+ b1) into one (8, 128) f32 slab.
    consts = jnp.zeros((8, MLP_HIDDEN), jnp.float32)
    consts = consts.at[0, :C].set(params["ln1w"])
    consts = consts.at[1, :C].set(params["ln1b"])
    consts = consts.at[2, :C].set(params["bo"])
    consts = consts.at[3, :C].set(params["ln2w"])
    consts = consts.at[4, :C].set(params["ln2b"])
    consts = consts.at[5, :C].set(params["b2"])
    consts = consts.at[6, :].set(params["b1"])

    grid_spec = pltpu.PrefetchScalarGridSpec(
        num_scalar_prefetch=0,
        grid=(B // B_BLK,),                                   # batch axis -> 2 steps
        in_specs=[
            pl.BlockSpec((B_BLK, N, C), lambda b: (b, 0, 0)),         # x
            pl.BlockSpec((8, MLP_HIDDEN), lambda b: (0, 0)),          # constants (resident)
            pl.BlockSpec((C, 3 * C), lambda b: (0, 0)),               # fused QKV weight
            pl.BlockSpec((C, C), lambda b: (0, 0)),                   # wo
            pl.BlockSpec((C, MLP_HIDDEN), lambda b: (0, 0)),          # w1
            pl.BlockSpec((MLP_HIDDEN, C), lambda b: (0, 0)),          # w2
        ],
        out_specs=pl.BlockSpec((B_BLK, N, C), lambda b: (b, 0, 0)),
        scratch_shapes=[pltpu.VMEM((rows, C), jnp.float32)],          # per-step attn output
    )

    out = pl.pallas_call(
        block_kernel,
        out_shape=jax.ShapeDtypeStruct((B, N, C), x.dtype),
        grid_spec=grid_spec,
        compiler_params=pltpu.CompilerParams(
            dimension_semantics=("parallel",)),               # shards across v7x's 2 TCs
    )(x, consts, wqkv, wo, w1, w2)

    return out


# ---------------- plain-JAX reference (correctness sanity check) ----------------
def ref_block(x, p):
    def ln(t, w, b):
        mu = t.mean(-1, keepdims=True)
        var = ((t - mu) ** 2).mean(-1, keepdims=True)
        return (t - mu) / jnp.sqrt(var + EPS) * w + b

    B, N, C = x.shape
    xn = ln(x, p["ln1w"], p["ln1b"])
    q = xn @ p["wq"].T
    k = xn @ p["wk"].T
    v = xn @ p["wv"].T

    def heads(t):
        return t.reshape(B, N, NUM_HEADS, HEAD_DIM).transpose(0, 2, 1, 3)

    qh, kh, vh = heads(q), heads(k), heads(v)
    s = jnp.einsum("bhnd,bhmd->bhnm", qh, kh) * HEAD_DIM ** (-0.5)
    a = jax.nn.softmax(s, axis=-1)
    o = jnp.einsum("bhnm,bhmd->bhnd", a, vh).transpose(0, 2, 1, 3).reshape(B, N, C)
    o = o @ p["wo"].T + p["bo"]
    x = x + o

    xn2 = ln(x, p["ln2w"], p["ln2b"])
    h = jax.nn.gelu(xn2 @ p["w1"].T + p["b1"], approximate=False)
    h = h @ p["w2"].T + p["b2"]
    return x + h


def init_params(key):
    ks = jax.random.split(key, 8)
    std = 0.02
    return {
        "ln1w": jnp.ones((DIM,), jnp.float32),
        "ln1b": jnp.zeros((DIM,), jnp.float32),
        "wq": jax.random.normal(ks[0], (DIM, DIM), jnp.float32) * std,
        "wk": jax.random.normal(ks[1], (DIM, DIM), jnp.float32) * std,
        "wv": jax.random.normal(ks[2], (DIM, DIM), jnp.float32) * std,
        "wo": jax.random.normal(ks[3], (DIM, DIM), jnp.float32) * std,
        "bo": jax.random.normal(ks[4], (DIM,), jnp.float32) * std,
        "ln2w": jnp.ones((DIM,), jnp.float32),
        "ln2b": jnp.zeros((DIM,), jnp.float32),
        "w1": jax.random.normal(ks[5], (MLP_HIDDEN, DIM), jnp.float32) * std,
        "b1": jnp.zeros((MLP_HIDDEN,), jnp.float32),
        "w2": jax.random.normal(ks[6], (DIM, MLP_HIDDEN), jnp.float32) * std,
        "b2": jnp.zeros((DIM,), jnp.float32),
    }


if __name__ == "__main__":
    key = jax.random.PRNGKey(0)
    kx, kp = jax.random.split(key)
    x = jax.random.normal(kx, (BATCH, SEQ, DIM), jnp.float32)
    params = init_params(kp)

    out = vit_block(x, params)
    out = jax.block_until_ready(out)

    ref = ref_block(x, params)
    assert out.shape == (BATCH, SEQ, DIM)
    # bf16 MXU operands + approx reciprocal => relax tolerance vs the f32 reference.
    err = float(jnp.max(jnp.abs(out - ref)))
    assert jnp.allclose(out, ref, rtol=1e-2, atol=1e-2), err

    print("KERNEL_OK")
</pallas_src>

<mosaic_0001>
module attributes {stable_mosaic.version = 11 : i64} {
  func.func @block_kernel(%arg0: i32, %arg1: memref<1x8x32xf32, #tpu.memory_space<vmem>>, %arg2: memref<8x128xf32, #tpu.memory_space<vmem>>, %arg3: memref<32x96xbf16, #tpu.memory_space<vmem>>, %arg4: memref<32x32xbf16, #tpu.memory_space<vmem>>, %arg5: memref<32x128xbf16, #tpu.memory_space<vmem>>, %arg6: memref<128x32xbf16, #tpu.memory_space<vmem>>, %arg7: memref<1x8x32xf32, #tpu.memory_space<vmem>>, %arg8: memref<8x32xf32, #tpu.memory_space<vmem>>) attributes {dimension_semantics = [#tpu.dimension_semantics<parallel>], iteration_bounds = array<i64: 2>, scalar_prefetch = 0 : i64, scratch_operands = 1 : i64, tpu.core_type = #tpu.core_type<tc>, window_params = [{transform_indices = @transform_0, window_bounds = array<i64: 1, 8, 32>}, {pipeline_mode = #tpu.pipeline_mode<synchronous>, transform_indices = @transform_1, window_bounds = array<i64: 8, 128>}, {pipeline_mode = #tpu.pipeline_mode<synchronous>, transform_indices = @transform_2, window_bounds = array<i64: 32, 96>}, {pipeline_mode = #tpu.pipeline_mode<synchronous>, transform_indices = @transform_3, window_bounds = array<i64: 32, 32>}, {pipeline_mode = #tpu.pipeline_mode<synchronous>, transform_indices = @transform_4, window_bounds = array<i64: 32, 128>}, {pipeline_mode = #tpu.pipeline_mode<synchronous>, transform_indices = @transform_5, window_bounds = array<i64: 128, 32>}, {transform_indices = @transform_6, window_bounds = array<i64: 1, 8, 32>}]} {
    %c0 = arith.constant 0 : index
    %c0_0 = arith.constant 0 : index
    %c0_1 = arith.constant 0 : index
    %0 = vector.load %arg1[%c0, %c0_0, %c0_1] : memref<1x8x32xf32, #tpu.memory_space<vmem>>, vector<1x8x32xf32>
    %1 = vector.shape_cast %0 : vector<1x8x32xf32> to vector<8x32xf32>
    %c0_2 = arith.constant 0 : index
    %c0_3 = arith.constant 0 : index
    %2 = vector.load %arg2[%c0_2, %c0_3] : memref<8x128xf32, #tpu.memory_space<vmem>>, vector<8x128xf32>
    %3 = vector.extract_strided_slice %2 {offsets = [0, 0], sizes = [1, 32], strides = [1, 1]} : vector<8x128xf32> to vector<1x32xf32>
    %4 = vector.extract_strided_slice %2 {offsets = [1, 0], sizes = [1, 32], strides = [1, 1]} : vector<8x128xf32> to vector<1x32xf32>
    %5 = vector.extract_strided_slice %2 {offsets = [2, 0], sizes = [1, 32], strides = [1, 1]} : vector<8x128xf32> to vector<1x32xf32>
    %6 = vector.extract_strided_slice %2 {offsets = [3, 0], sizes = [1, 32], strides = [1, 1]} : vector<8x128xf32> to vector<1x32xf32>
    %7 = vector.extract_strided_slice %2 {offsets = [4, 0], sizes = [1, 32], strides = [1, 1]} : vector<8x128xf32> to vector<1x32xf32>
    %8 = vector.extract_strided_slice %2 {offsets = [5, 0], sizes = [1, 32], strides = [1, 1]} : vector<8x128xf32> to vector<1x32xf32>
    %9 = vector.extract_strided_slice %2 {offsets = [6, 0], sizes = [1, 128], strides = [1, 1]} : vector<8x128xf32> to vector<1x128xf32>
    %cst = arith.constant dense<0.000000e+00> : vector<8xf32>
    %10 = vector.multi_reduction <add>, %1, %cst [1] : vector<8x32xf32> to vector<8xf32>
    %11 = vector.shape_cast %10 : vector<8xf32> to vector<8x1xf32>
    %cst_4 = arith.constant 3.200000e+01 : f32
    %12 = vector.broadcast %cst_4 : f32 to vector<8x1xf32>
    %13 = arith.divf %11, %12 : vector<8x1xf32>
    %14 = vector.broadcast %13 : vector<8x1xf32> to vector<8x32xf32>
    %15 = arith.subf %1, %14 : vector<8x32xf32>
    %16 = arith.mulf %15, %15 : vector<8x32xf32>
    %cst_5 = arith.constant dense<0.000000e+00> : vector<8xf32>
    %17 = vector.multi_reduction <add>, %16, %cst_5 [1] : vector<8x32xf32> to vector<8xf32>
    %18 = vector.shape_cast %17 : vector<8xf32> to vector<8x1xf32>
    %cst_6 = arith.constant 3.200000e+01 : f32
    %19 = vector.broadcast %cst_6 : f32 to vector<8x1xf32>
    %20 = arith.divf %18, %19 : vector<8x1xf32>
    %21 = vector.broadcast %13 : vector<8x1xf32> to vector<8x32xf32>
    %22 = arith.subf %1, %21 : vector<8x32xf32>
    %cst_7 = arith.constant 9.99999974E-6 : f32
    %23 = vector.broadcast %cst_7 : f32 to vector<8x1xf32>
    %24 = arith.addf %20, %23 : vector<8x1xf32>
    %25 = math.rsqrt %24 : vector<8x1xf32>
    %26 = vector.broadcast %25 : vector<8x1xf32> to vector<8x32xf32>
    %27 = arith.mulf %22, %26 : vector<8x32xf32>
    %28 = vector.broadcast %3 : vector<1x32xf32> to vector<8x32xf32>
    %29 = arith.mulf %27, %28 : vector<8x32xf32>
    %30 = vector.broadcast %4 : vector<1x32xf32> to vector<8x32xf32>
    %31 = arith.addf %29, %30 : vector<8x32xf32>
    %32 = arith.truncf %31 : vector<8x32xf32> to vector<8x32xbf16>
    %c0_8 = arith.constant 0 : index
    %c0_9 = arith.constant 0 : index
    %33 = vector.load %arg3[%c0_8, %c0_9] : memref<32x96xbf16, #tpu.memory_space<vmem>>, vector<32x96xbf16>
    %cst_10 = arith.constant dense<0.000000e+00> : vector<8x96xf32>
    %34 = tpu.matmul %32, %33, %cst_10 {dimension_numbers = #tpu.dot_dimension_numbers<[1], [0], [0], [1], [0, 0, 1, 1], [], []>} : vector<8x32xbf16>, vector<32x96xbf16>, vector<8x96xf32> -> vector<8x96xf32>
    %35 = vector.extract_strided_slice %34 {offsets = [0, 0], sizes = [8, 32], strides = [1, 1]} : vector<8x96xf32> to vector<8x32xf32>
    %36 = vector.shape_cast %35 : vector<8x32xf32> to vector<1x8x32xf32>
    %37 = vector.extract_strided_slice %34 {offsets = [0, 32], sizes = [8, 32], strides = [1, 1]} : vector<8x96xf32> to vector<8x32xf32>
    %38 = vector.shape_cast %37 : vector<8x32xf32> to vector<1x8x32xf32>
    %39 = vector.extract_strided_slice %34 {offsets = [0, 64], sizes = [8, 32], strides = [1, 1]} : vector<8x96xf32> to vector<8x32xf32>
    %40 = vector.shape_cast %39 : vector<8x32xf32> to vector<1x8x32xf32>
    %41 = vector.extract_strided_slice %36 {offsets = [0, 0, 0], sizes = [1, 8, 8], strides = [1, 1, 1]} : vector<1x8x32xf32> to vector<1x8x8xf32>
    %42 = arith.truncf %41 : vector<1x8x8xf32> to vector<1x8x8xbf16>
    %43 = vector.extract_strided_slice %38 {offsets = [0, 0, 0], sizes = [1, 8, 8], strides = [1, 1, 1]} : vector<1x8x32xf32> to vector<1x8x8xf32>
    %44 = arith.truncf %43 : vector<1x8x8xf32> to vector<1x8x8xbf16>
    %45 = vector.extract_strided_slice %40 {offsets = [0, 0, 0], sizes = [1, 8, 8], strides = [1, 1, 1]} : vector<1x8x32xf32> to vector<1x8x8xf32>
    %46 = arith.truncf %45 : vector<1x8x8xf32> to vector<1x8x8xbf16>
    "tpu.trace_start"() <{level = 10 : i32, message = "bnd,bmd->bnm"}> : () -> ()
    %cst_11 = arith.constant dense<0.000000e+00> : vector<1x8x8xf32>
    %47 = tpu.matmul %42, %44, %cst_11 {dimension_numbers = #tpu.dot_dimension_numbers<[2], [2], [1], [1], [0, 0, 0, 1, 1, 1], [0], [0]>} : vector<1x8x8xbf16>, vector<1x8x8xbf16>, vector<1x8x8xf32> -> vector<1x8x8xf32>
    "tpu.trace_stop"() : () -> ()
    %48 = math.exp %47 : vector<1x8x8xf32>
    %cst_12 = arith.constant dense<0.000000e+00> : vector<1x8xf32>
    %49 = vector.multi_reduction <add>, %48, %cst_12 [2] : vector<1x8x8xf32> to vector<1x8xf32>
    %50 = vector.shape_cast %49 : vector<1x8xf32> to vector<1x8x1xf32>
    %51 = tpu.reciprocal %50 {approx = true} : vector<1x8x1xf32> -> vector<1x8x1xf32>
    %52 = vector.broadcast %51 : vector<1x8x1xf32> to vector<1x8x8xf32>
    %53 = arith.mulf %48, %52 : vector<1x8x8xf32>
    %54 = arith.truncf %53 : vector<1x8x8xf32> to vector<1x8x8xbf16>
    "tpu.trace_start"() <{level = 10 : i32, message = "bnm,bmd->bnd"}> : () -> ()
    %cst_13 = arith.constant dense<0.000000e+00> : vector<1x8x8xf32>
    %55 = tpu.matmul %54, %46, %cst_13 {dimension_numbers = #tpu.dot_dimension_numbers<[2], [1], [1], [2], [0, 0, 0, 1, 1, 2], [0], [0]>} : vector<1x8x8xbf16>, vector<1x8x8xbf16>, vector<1x8x8xf32> -> vector<1x8x8xf32>
    "tpu.trace_stop"() : () -> ()
    %56 = vector.shape_cast %55 : vector<1x8x8xf32> to vector<8x8xf32>
    %c0_14 = arith.constant 0 : index
    %c0_15 = arith.constant 0 : index
    %57 = vector.load %arg8[%c0_14, %c0_15] : memref<8x32xf32, #tpu.memory_space<vmem>>, vector<8x8xf32>
    tpu.vector_store %arg8[%c0_14, %c0_15], %56 {strides = array<i32>} : memref<8x32xf32, #tpu.memory_space<vmem>>, vector<8x8xf32>,
    %58 = vector.extract_strided_slice %36 {offsets = [0, 0, 8], sizes = [1, 8, 8], strides = [1, 1, 1]} : vector<1x8x32xf32> to vector<1x8x8xf32>
    %59 = arith.truncf %58 : vector<1x8x8xf32> to vector<1x8x8xbf16>
    %60 = vector.extract_strided_slice %38 {offsets = [0, 0, 8], sizes = [1, 8, 8], strides = [1, 1, 1]} : vector<1x8x32xf32> to vector<1x8x8xf32>
    %61 = arith.truncf %60 : vector<1x8x8xf32> to vector<1x8x8xbf16>
    %62 = vector.extract_strided_slice %40 {offsets = [0, 0, 8], sizes = [1, 8, 8], strides = [1, 1, 1]} : vector<1x8x32xf32> to vector<1x8x8xf32>
    %63 = arith.truncf %62 : vector<1x8x8xf32> to vector<1x8x8xbf16>
    "tpu.trace_start"() <{level = 10 : i32, message = "bnd,bmd->bnm"}> : () -> ()
    %cst_16 = arith.constant dense<0.000000e+00> : vector<1x8x8xf32>
    %64 = tpu.matmul %59, %61, %cst_16 {dimension_numbers = #tpu.dot_dimension_numbers<[2], [2], [1], [1], [0, 0, 0, 1, 1, 1], [0], [0]>} : vector<1x8x8xbf16>, vector<1x8x8xbf16>, vector<1x8x8xf32> -> vector<1x8x8xf32>
    "tpu.trace_stop"() : () -> ()
    %65 = math.exp %64 : vector<1x8x8xf32>
    %cst_17 = arith.constant dense<0.000000e+00> : vector<1x8xf32>
    %66 = vector.multi_reduction <add>, %65, %cst_17 [2] : vector<1x8x8xf32> to vector<1x8xf32>
    %67 = vector.shape_cast %66 : vector<1x8xf32> to vector<1x8x1xf32>
    %68 = tpu.reciprocal %67 {approx = true} : vector<1x8x1xf32> -> vector<1x8x1xf32>
    %69 = vector.broadcast %68 : vector<1x8x1xf32> to vector<1x8x8xf32>
    %70 = arith.mulf %65, %69 : vector<1x8x8xf32>
    %71 = arith.truncf %70 : vector<1x8x8xf32> to vector<1x8x8xbf16>
    "tpu.trace_start"() <{level = 10 : i32, message = "bnm,bmd->bnd"}> : () -> ()
    %cst_18 = arith.constant dense<0.000000e+00> : vector<1x8x8xf32>
    %72 = tpu.matmul %71, %63, %cst_18 {dimension_numbers = #tpu.dot_dimension_numbers<[2], [1], [1], [2], [0, 0, 0, 1, 1, 2], [0], [0]>} : vector<1x8x8xbf16>, vector<1x8x8xbf16>, vector<1x8x8xf32> -> vector<1x8x8xf32>
    "tpu.trace_stop"() : () -> ()
    %73 = vector.shape_cast %72 : vector<1x8x8xf32> to vector<8x8xf32>
    %c0_19 = arith.constant 0 : index
    %c8 = arith.constant 8 : index
    %74 = vector.load %arg8[%c0_19, %c8] : memref<8x32xf32, #tpu.memory_space<vmem>>, vector<8x8xf32>
    tpu.vector_store %arg8[%c0_19, %c8], %73 {strides = array<i32>} : memref<8x32xf32, #tpu.memory_space<vmem>>, vector<8x8xf32>,
    %75 = vector.extract_strided_slice %36 {offsets = [0, 0, 16], sizes = [1, 8, 8], strides = [1, 1, 1]} : vector<1x8x32xf32> to vector<1x8x8xf32>
    %76 = arith.truncf %75 : vector<1x8x8xf32> to vector<1x8x8xbf16>
    %77 = vector.extract_strided_slice %38 {offsets = [0, 0, 16], sizes = [1, 8, 8], strides = [1, 1, 1]} : vector<1x8x32xf32> to vector<1x8x8xf32>
    %78 = arith.truncf %77 : vector<1x8x8xf32> to vector<1x8x8xbf16>
    %79 = vector.extract_strided_slice %40 {offsets = [0, 0, 16], sizes = [1, 8, 8], strides = [1, 1, 1]} : vector<1x8x32xf32> to vector<1x8x8xf32>
    %80 = arith.truncf %79 : vector<1x8x8xf32> to vector<1x8x8xbf16>
    "tpu.trace_start"() <{level = 10 : i32, message = "bnd,bmd->bnm"}> : () -> ()
    %cst_20 = arith.constant dense<0.000000e+00> : vector<1x8x8xf32>
    %81 = tpu.matmul %76, %78, %cst_20 {dimension_numbers = #tpu.dot_dimension_numbers<[2], [2], [1], [1], [0, 0, 0, 1, 1, 1], [0], [0]>} : vector<1x8x8xbf16>, vector<1x8x8xbf16>, vector<1x8x8xf32> -> vector<1x8x8xf32>
    "tpu.trace_stop"() : () -> ()
    %82 = math.exp %81 : vector<1x8x8xf32>
    %cst_21 = arith.constant dense<0.000000e+00> : vector<1x8xf32>
    %83 = vector.multi_reduction <add>, %82, %cst_21 [2] : vector<1x8x8xf32> to vector<1x8xf32>
    %84 = vector.shape_cast %83 : vector<1x8xf32> to vector<1x8x1xf32>
    %85 = tpu.reciprocal %84 {approx = true} : vector<1x8x1xf32> -> vector<1x8x1xf32>
    %86 = vector.broadcast %85 : vector<1x8x1xf32> to vector<1x8x8xf32>
    %87 = arith.mulf %82, %86 : vector<1x8x8xf32>
    %88 = arith.truncf %87 : vector<1x8x8xf32> to vector<1x8x8xbf16>
    "tpu.trace_start"() <{level = 10 : i32, message = "bnm,bmd->bnd"}> : () -> ()
    %cst_22 = arith.constant dense<0.000000e+00> : vector<1x8x8xf32>
    %89 = tpu.matmul %88, %80, %cst_22 {dimension_numbers = #tpu.dot_dimension_numbers<[2], [1], [1], [2], [0, 0, 0, 1, 1, 2], [0], [0]>} : vector<1x8x8xbf16>, vector<1x8x8xbf16>, vector<1x8x8xf32> -> vector<1x8x8xf32>
    "tpu.trace_stop"() : () -> ()
    %90 = vector.shape_cast %89 : vector<1x8x8xf32> to vector<8x8xf32>
    %c0_23 = arith.constant 0 : index
    %c16 = arith.constant 16 : index
    %91 = vector.load %arg8[%c0_23, %c16] : memref<8x32xf32, #tpu.memory_space<vmem>>, vector<8x8xf32>
    tpu.vector_store %arg8[%c0_23, %c16], %90 {strides = array<i32>} : memref<8x32xf32, #tpu.memory_space<vmem>>, vector<8x8xf32>,
    %92 = vector.extract_strided_slice %36 {offsets = [0, 0, 24], sizes = [1, 8, 8], strides = [1, 1, 1]} : vector<1x8x32xf32> to vector<1x8x8xf32>
    %93 = arith.truncf %92 : vector<1x8x8xf32> to vector<1x8x8xbf16>
    %94 = vector.extract_strided_slice %38 {offsets = [0, 0, 24], sizes = [1, 8, 8], strides = [1, 1, 1]} : vector<1x8x32xf32> to vector<1x8x8xf32>
    %95 = arith.truncf %94 : vector<1x8x8xf32> to vector<1x8x8xbf16>
    %96 = vector.extract_strided_slice %40 {offsets = [0, 0, 24], sizes = [1, 8, 8], strides = [1, 1, 1]} : vector<1x8x32xf32> to vector<1x8x8xf32>
    %97 = arith.truncf %96 : vector<1x8x8xf32> to vector<1x8x8xbf16>
    "tpu.trace_start"() <{level = 10 : i32, message = "bnd,bmd->bnm"}> : () -> ()
    %cst_24 = arith.constant dense<0.000000e+00> : vector<1x8x8xf32>
    %98 = tpu.matmul %93, %95, %cst_24 {dimension_numbers = #tpu.dot_dimension_numbers<[2], [2], [1], [1], [0, 0, 0, 1, 1, 1], [0], [0]>} : vector<1x8x8xbf16>, vector<1x8x8xbf16>, vector<1x8x8xf32> -> vector<1x8x8xf32>
    "tpu.trace_stop"() : () -> ()
    %99 = math.exp %98 : vector<1x8x8xf32>
    %cst_25 = arith.constant dense<0.000000e+00> : vector<1x8xf32>
    %100 = vector.multi_reduction <add>, %99, %cst_25 [2] : vector<1x8x8xf32> to vector<1x8xf32>
    %101 = vector.shape_cast %100 : vector<1x8xf32> to vector<1x8x1xf32>
    %102 = tpu.reciprocal %101 {approx = true} : vector<1x8x1xf32> -> vector<1x8x1xf32>
    %103 = vector.broadcast %102 : vector<1x8x1xf32> to vector<1x8x8xf32>
    %104 = arith.mulf %99, %103 : vector<1x8x8xf32>
    %105 = arith.truncf %104 : vector<1x8x8xf32> to vector<1x8x8xbf16>
    "tpu.trace_start"() <{level = 10 : i32, message = "bnm,bmd->bnd"}> : () -> ()
    %cst_26 = arith.constant dense<0.000000e+00> : vector<1x8x8xf32>
    %106 = tpu.matmul %105, %97, %cst_26 {dimension_numbers = #tpu.dot_dimension_numbers<[2], [1], [1], [2], [0, 0, 0, 1, 1, 2], [0], [0]>} : vector<1x8x8xbf16>, vector<1x8x8xbf16>, vector<1x8x8xf32> -> vector<1x8x8xf32>
    "tpu.trace_stop"() : () -> ()
    %107 = vector.shape_cast %106 : vector<1x8x8xf32> to vector<8x8xf32>
    %c0_27 = arith.constant 0 : index
    %c24 = arith.constant 24 : index
    %108 = vector.load %arg8[%c0_27, %c24] : memref<8x32xf32, #tpu.memory_space<vmem>>, vector<8x8xf32>
    tpu.vector_store %arg8[%c0_27, %c24], %107 {strides = array<i32>} : memref<8x32xf32, #tpu.memory_space<vmem>>, vector<8x8xf32>,
    %c0_28 = arith.constant 0 : index
    %c0_29 = arith.constant 0 : index
    %109 = vector.load %arg8[%c0_28, %c0_29] : memref<8x32xf32, #tpu.memory_space<vmem>>, vector<8x32xf32>
    %110 = arith.truncf %109 : vector<8x32xf32> to vector<8x32xbf16>
    %c0_30 = arith.constant 0 : index
    %c0_31 = arith.constant 0 : index
    %111 = vector.load %arg4[%c0_30, %c0_31] : memref<32x32xbf16, #tpu.memory_space<vmem>>, vector<32x32xbf16>
    %cst_32 = arith.constant dense<0.000000e+00> : vector<8x32xf32>
    %112 = tpu.matmul %110, %111, %cst_32 {dimension_numbers = #tpu.dot_dimension_numbers<[1], [0], [0], [1], [0, 0, 1, 1], [], []>} : vector<8x32xbf16>, vector<32x32xbf16>, vector<8x32xf32> -> vector<8x32xf32>
    %113 = arith.addf %1, %112 : vector<8x32xf32>
    %114 = vector.broadcast %5 : vector<1x32xf32> to vector<8x32xf32>
    %115 = arith.addf %113, %114 : vector<8x32xf32>
    %cst_33 = arith.constant dense<0.000000e+00> : vector<8xf32>
    %116 = vector.multi_reduction <add>, %115, %cst_33 [1] : vector<8x32xf32> to vector<8xf32>
    %117 = vector.shape_cast %116 : vector<8xf32> to vector<8x1xf32>
    %cst_34 = arith.constant 3.200000e+01 : f32
    %118 = vector.broadcast %cst_34 : f32 to vector<8x1xf32>
    %119 = arith.divf %117, %118 : vector<8x1xf32>
    %120 = vector.broadcast %119 : vector<8x1xf32> to vector<8x32xf32>
    %121 = arith.subf %115, %120 : vector<8x32xf32>
    %122 = arith.mulf %121, %121 : vector<8x32xf32>
    %cst_35 = arith.constant dense<0.000000e+00> : vector<8xf32>
    %123 = vector.multi_reduction <add>, %122, %cst_35 [1] : vector<8x32xf32> to vector<8xf32>
    %124 = vector.shape_cast %123 : vector<8xf32> to vector<8x1xf32>
    %cst_36 = arith.constant 3.200000e+01 : f32
    %125 = vector.broadcast %cst_36 : f32 to vector<8x1xf32>
    %126 = arith.divf %124, %125 : vector<8x1xf32>
    %127 = vector.broadcast %119 : vector<8x1xf32> to vector<8x32xf32>
    %128 = arith.subf %115, %127 : vector<8x32xf32>
    %cst_37 = arith.constant 9.99999974E-6 : f32
    %129 = vector.broadcast %cst_37 : f32 to vector<8x1xf32>
    %130 = arith.addf %126, %129 : vector<8x1xf32>
    %131 = math.rsqrt %130 : vector<8x1xf32>
    %132 = vector.broadcast %131 : vector<8x1xf32> to vector<8x32xf32>
    %133 = arith.mulf %128, %132 : vector<8x32xf32>
    %134 = vector.broadcast %6 : vector<1x32xf32> to vector<8x32xf32>
    %135 = arith.mulf %133, %134 : vector<8x32xf32>
    %136 = vector.broadcast %7 : vector<1x32xf32> to vector<8x32xf32>
    %137 = arith.addf %135, %136 : vector<8x32xf32>
    %138 = arith.truncf %137 : vector<8x32xf32> to vector<8x32xbf16>
    %c0_38 = arith.constant 0 : index
    %c0_39 = arith.constant 0 : index
    %139 = vector.load %arg5[%c0_38, %c0_39] : memref<32x128xbf16, #tpu.memory_space<vmem>>, vector<32x128xbf16>
    %cst_40 = arith.constant dense<0.000000e+00> : vector<8x128xf32>
    %140 = tpu.matmul %138, %139, %cst_40 {dimension_numbers = #tpu.dot_dimension_numbers<[1], [0], [0], [1], [0, 0, 1, 1], [], []>} : vector<8x32xbf16>, vector<32x128xbf16>, vector<8x128xf32> -> vector<8x128xf32>
    %141 = vector.broadcast %9 : vector<1x128xf32> to vector<8x128xf32>
    %142 = arith.addf %140, %141 : vector<8x128xf32>
    %cst_41 = arith.constant 5.000000e-01 : f32
    %143 = vector.broadcast %cst_41 : f32 to vector<8x128xf32>
    %144 = arith.mulf %143, %142 : vector<8x128xf32>
    %cst_42 = arith.constant 0.707106769 : f32
    %145 = vector.broadcast %cst_42 : f32 to vector<8x128xf32>
    %146 = arith.mulf %142, %145 : vector<8x128xf32>
    %147 = math.erf %146 : vector<8x128xf32>
    %cst_43 = arith.constant 1.000000e+00 : f32
    %148 = vector.broadcast %cst_43 : f32 to vector<8x128xf32>
    %149 = arith.addf %148, %147 : vector<8x128xf32>
    %150 = arith.mulf %144, %149 : vector<8x128xf32>
    %151 = arith.truncf %150 : vector<8x128xf32> to vector<8x128xbf16>
    %c0_44 = arith.constant 0 : index
    %c0_45 = arith.constant 0 : index
    %152 = vector.load %arg6[%c0_44, %c0_45] : memref<128x32xbf16, #tpu.memory_space<vmem>>, vector<128x32xbf16>
    %cst_46 = arith.constant dense<0.000000e+00> : vector<8x32xf32>
    %153 = tpu.matmul %151, %152, %cst_46 {dimension_numbers = #tpu.dot_dimension_numbers<[1], [0], [0], [1], [0, 0, 1, 1], [], []>} : vector<8x128xbf16>, vector<128x32xbf16>, vector<8x32xf32> -> vector<8x32xf32>
    %154 = vector.broadcast %8 : vector<1x32xf32> to vector<8x32xf32>
    %155 = arith.addf %153, %154 : vector<8x32xf32>
    %156 = arith.addf %115, %155 : vector<8x32xf32>
    %157 = vector.shape_cast %156 : vector<8x32xf32> to vector<1x8x32xf32>
    %c0_47 = arith.constant 0 : index
    %c0_48 = arith.constant 0 : index
    %c0_49 = arith.constant 0 : index
    %158 = vector.load %arg7[%c0_47, %c0_48, %c0_49] : memref<1x8x32xf32, #tpu.memory_space<vmem>>, vector<1x8x32xf32>
    tpu.vector_store %arg7[%c0_47, %c0_48, %c0_49], %157 {strides = array<i32>} : memref<1x8x32xf32, #tpu.memory_space<vmem>>, vector<1x8x32xf32>,
    return
  }
  func.func @transform_0(%arg0: i32) -> (i32, i32, i32) {
    %c0_i32 = arith.constant 0 : i32
    %c0_i32_0 = arith.constant 0 : i32
    %c0_i32_1 = arith.constant 0 : i32
    return %arg0, %c0_i32, %c0_i32_0 : i32, i32, i32
  }
  func.func @transform_1(%arg0: i32) -> (i32, i32) {
    %c0_i32 = arith.constant 0 : i32
    %c0_i32_0 = arith.constant 0 : i32
    %c0_i32_1 = arith.constant 0 : i32
    return %c0_i32, %c0_i32_0 : i32, i32
  }
  func.func @transform_2(%arg0: i32) -> (i32, i32) {
    %c0_i32 = arith.constant 0 : i32
    %c0_i32_0 = arith.constant 0 : i32
    %c0_i32_1 = arith.constant 0 : i32
    return %c0_i32, %c0_i32_0 : i32, i32
  }
  func.func @transform_3(%arg0: i32) -> (i32, i32) {
    %c0_i32 = arith.constant 0 : i32
    %c0_i32_0 = arith.constant 0 : i32
    %c0_i32_1 = arith.constant 0 : i32
    return %c0_i32, %c0_i32_0 : i32, i32
  }
  func.func @transform_4(%arg0: i32) -> (i32, i32) {
    %c0_i32 = arith.constant 0 : i32
    %c0_i32_0 = arith.constant 0 : i32
    %c0_i32_1 = arith.constant 0 : i32
    return %c0_i32, %c0_i32_0 : i32, i32
  }
  func.func @transform_5(%arg0: i32) -> (i32, i32) {
    %c0_i32 = arith.constant 0 : i32
    %c0_i32_0 = arith.constant 0 : i32
    %c0_i32_1 = arith.constant 0 : i32
    return %c0_i32, %c0_i32_0 : i32, i32
  }
  func.func @transform_6(%arg0: i32) -> (i32, i32, i32) {
    %c0_i32 = arith.constant 0 : i32
    %c0_i32_0 = arith.constant 0 : i32
    %c0_i32_1 = arith.constant 0 : i32
    return %arg0, %c0_i32, %c0_i32_0 : i32, i32, i32
  }
}

</mosaic_0001>

<llo_original>
// kernel: tpu_custom_call.1
$region0: #{tpu_custom_call.1}
  #allocation0 [shape = 'u32[]', space=smem, size = 0x4, offset = 0x4, fixed_abs, tag = 'smem constant byte address 0x4 - core index']
  #allocation1 [shape = 'u32[144,128]{1,0:T(1,128)}', space=vmem, size = 0x12000, scoped, tag = 'internal scratch']
  #allocation2 [shape = 'f32[8,32]{1,0:T(8,128)}', space=vmem, size = 0x1000, scoped, tag = 'scratch operand']
  %s0 = inlined_call_operand.vmem [shape: f32[2,8,32], index: 0, kind: input, shape index: {}]
  %s1 = inlined_call_operand.vmem [shape: f32[8,128], index: 1, kind: input, shape index: {}]
  %s2 = inlined_call_operand.vmem [shape: bf16[32,96], index: 2, kind: input, shape index: {}]
  %s3 = inlined_call_operand.vmem [shape: bf16[32,32], index: 3, kind: input, shape index: {}]
  %s4 = inlined_call_operand.vmem [shape: bf16[32,128], index: 4, kind: input, shape index: {}]
  %s5 = inlined_call_operand.vmem [shape: bf16[128,32], index: 5, kind: input, shape index: {}]
  %s6 = inlined_call_operand.hbm [shape: f32[2,8,32], index: 6, kind: output, shape index: {}]
  %s7 = sld [smem:[#allocation0]]
  $region57: #{tpu_custom_call.1} parent=0
    _
  %s9 = ssub.s32 1, %s7
  %s10 = scalar_select 0, %s9, %s7
  $region1: #{tpu_custom_call.1} parent=0
    #allocation3 [shape = 'u8[8192]{0}', space=vmem, size = 0x2000, scoped, tag = 'output window, operand 0']
    #allocation4 [shape = 's32[2]{0}', space=sflag, size = 0x8, scoped, tag = 'scoped memory for tpu_custom_call.1']
    %11 = vsyncpa [#allocation4], 0
    %s12 = scalar_lea.sflag [#allocation4], 1
    %13 = vsyncpa %s12, 0
    loop: start=0, step=1, limit=4
    $region2: #{tpu_custom_call.1} parent=1 // loop_pre_header
      _
    $region3: #{tpu_custom_call.1} parent=1 // loop_header
      %s15 = sphi 0, %s19
      %p16 = scmp.ge.s32.totalorder %s15, 4
      %s25 = sphi 0, %s27
      %s28 = sphi 0, %s25
      %s29 = sphi 0, %s28
      %s45 = sphi 0, %s29
      %s49 = sphi 0, %s49
      %s51 = sphi 0, %s49
      %s52 = sphi 0, %s51
      %s66 = sphi 0, %s52
      %s70 = sphi 0, %s70
      %s72 = sphi 0, %s70
      %s73 = sphi 0, %s72
      %s87 = sphi 0, %s73
      %s91 = sphi 0, %s91
      %s93 = sphi 0, %s91
      %s94 = sphi 0, %s93
      %s108 = sphi 0, %s94
      %s112 = sphi 0, %s112
      %s114 = sphi 0, %s112
      %s115 = sphi 0, %s114
      %s129 = sphi 0, %s115
      %s133 = sphi 0, %s133
      %s135 = sphi 0, %s133
      %s136 = sphi 0, %s135
      %s150 = sphi 0, %s136
      %s156 = sphi 0, %s158
      %s159 = sphi 0, %s156
      %s160 = sphi 0, %s159
      %s176 = sphi 0, %s160
    $region4: #{tpu_custom_call.1} parent=1 // loop_header_branch
      %18 = sbr.rel (%p16) target = $region8
    $region5: #{tpu_custom_call.1} parent=1 // loop_body
      %s20 = ssub.s32 %s15, 1
      %s21 = ssub.s32 %s15, 2
      %s22 = sadd.s32 %s15, 1
      %s23 = ssub.s32 %s15, %s22
      %p24 = scmp.eq.s32.totalorder %s23, 0
      %s26 = sadd.s32 %s25, 1
      %s27 = scalar_select %p24, %s25, %s26
      %p30 = pneg %p24
      %p31 = scmp.eq.s32.totalorder %s15, 1
      %p32 = por %p30, %p31
      %p33 = scmp.ne.s32.totalorder %s25, %s28
      %p34 = scmp.eq.s32.totalorder %s15, 0
      %p35 = por %p33, %p34
      %p36 = scmp.ne.s32.totalorder %s25, %s28
      %p37 = scmp.eq.s32.totalorder %s20, 1
      %p38 = por %p36, %p37
      %p39 = scmp.ne.s32.totalorder %s28, %s29
      %p40 = scmp.eq.s32.totalorder %s20, 0
      %p41 = por %p39, %p40
      %p42 = scmp.ne.s32.totalorder %s28, %s29
      %p43 = scmp.eq.s32.totalorder %s21, 1
      %p44 = por %p42, %p43
      %p46 = scmp.ne.s32.totalorder %s29, %s45
      %p47 = scmp.eq.s32.totalorder %s21, 0
      %p48 = por %p46, %p47
      %s50 = sadd.s32 %s49, 1
      %p53 = scmp.eq.s32.totalorder %s15, 1
      %p54 = scmp.ne.s32.totalorder %s49, %s51
      %p55 = scmp.eq.s32.totalorder %s15, 0
      %p56 = por %p54, %p55
      %p57 = scmp.ne.s32.totalorder %s49, %s51
      %p58 = scmp.eq.s32.totalorder %s20, 1
      %p59 = por %p57, %p58
      %p60 = scmp.ne.s32.totalorder %s51, %s52
      %p61 = scmp.eq.s32.totalorder %s20, 0
      %p62 = por %p60, %p61
      %p63 = scmp.ne.s32.totalorder %s51, %s52
      %p64 = scmp.eq.s32.totalorder %s21, 1
      %p65 = por %p63, %p64
      %p67 = scmp.ne.s32.totalorder %s52, %s66
      %p68 = scmp.eq.s32.totalorder %s21, 0
      %p69 = por %p67, %p68
      %s71 = sadd.s32 %s70, 1
      %p74 = scmp.eq.s32.totalorder %s15, 1
      %p75 = scmp.ne.s32.totalorder %s70, %s72
      %p76 = scmp.eq.s32.totalorder %s15, 0
      %p77 = por %p75, %p76
      %p78 = scmp.ne.s32.totalorder %s70, %s72
      %p79 = scmp.eq.s32.totalorder %s20, 1
      %p80 = por %p78, %p79
      %p81 = scmp.ne.s32.totalorder %s72, %s73
      %p82 = scmp.eq.s32.totalorder %s20, 0
      %p83 = por %p81, %p82
      %p84 = scmp.ne.s32.totalorder %s72, %s73
      %p85 = scmp.eq.s32.totalorder %s21, 1
      %p86 = por %p84, %p85
      %p88 = scmp.ne.s32.totalorder %s73, %s87
      %p89 = scmp.eq.s32.totalorder %s21, 0
      %p90 = por %p88, %p89
      %s92 = sadd.s32 %s91, 1
      %p95 = scmp.eq.s32.totalorder %s15, 1
      %p96 = scmp.ne.s32.totalorder %s91, %s93
      %p97 = scmp.eq.s32.totalorder %s15, 0
      %p98 = por %p96, %p97
      %p99 = scmp.ne.s32.totalorder %s91, %s93
      %p100 = scmp.eq.s32.totalorder %s20, 1
      %p101 = por %p99, %p100
      %p102 = scmp.ne.s32.totalorder %s93, %s94
      %p103 = scmp.eq.s32.totalorder %s20, 0
      %p104 = por %p102, %p103
      %p105 = scmp.ne.s32.totalorder %s93, %s94
      %p106 = scmp.eq.s32.totalorder %s21, 1
      %p107 = por %p105, %p106
      %p109 = scmp.ne.s32.totalorder %s94, %s108
      %p110 = scmp.eq.s32.totalorder %s21, 0
      %p111 = por %p109, %p110
      %s113 = sadd.s32 %s112, 1
      %p116 = scmp.eq.s32.totalorder %s15, 1
      %p117 = scmp.ne.s32.totalorder %s112, %s114
      %p118 = scmp.eq.s32.totalorder %s15, 0
      %p119 = por %p117, %p118
      %p120 = scmp.ne.s32.totalorder %s112, %s114
      %p121 = scmp.eq.s32.totalorder %s20, 1
      %p122 = por %p120, %p121
      %p123 = scmp.ne.s32.totalorder %s114, %s115
      %p124 = scmp.eq.s32.totalorder %s20, 0
      %p125 = por %p123, %p124
      %p126 = scmp.ne.s32.totalorder %s114, %s115
      %p127 = scmp.eq.s32.totalorder %s21, 1
      %p128 = por %p126, %p127
      %p130 = scmp.ne.s32.totalorder %s115, %s129
      %p131 = scmp.eq.s32.totalorder %s21, 0
      %p132 = por %p130, %p131
      %s134 = sadd.s32 %s133, 1
      %p137 = scmp.eq.s32.totalorder %s15, 1
      %p138 = scmp.ne.s32.totalorder %s133, %s135
      %p139 = scmp.eq.s32.totalorder %s15, 0
      %p140 = por %p138, %p139
      %p141 = scmp.ne.s32.totalorder %s133, %s135
      %p142 = scmp.eq.s32.totalorder %s20, 1
      %p143 = por %p141, %p142
      %p144 = scmp.ne.s32.totalorder %s135, %s136
      %p145 = scmp.eq.s32.totalorder %s20, 0
      %p146 = por %p144, %p145
      %p147 = scmp.ne.s32.totalorder %s135, %s136
      %p148 = scmp.eq.s32.totalorder %s21, 1
      %p149 = por %p147, %p148
      %p151 = scmp.ne.s32.totalorder %s136, %s150
      %p152 = scmp.eq.s32.totalorder %s21, 0
      %p153 = por %p151, %p152
      %s154 = ssub.s32 %s15, %s22
      %p155 = scmp.eq.s32.totalorder %s154, 0
      %s157 = sadd.s32 %s156, 1
      %s158 = scalar_select %p155, %s156, %s157
      %p161 = pneg %p155
      %p162 = scmp.eq.s32.totalorder %s15, 1
      %p163 = por %p161, %p162
      %p164 = scmp.ne.s32.totalorder %s156, %s159
      %p165 = scmp.eq.s32.totalorder %s15, 0
      %p166 = por %p164, %p165
      %p167 = scmp.ne.s32.totalorder %s156, %s159
      %p168 = scmp.eq.s32.totalorder %s20, 1
      %p169 = por %p167, %p168
      %p170 = scmp.ne.s32.totalorder %s159, %s160
      %p171 = scmp.eq.s32.totalorder %s20, 0
      %p172 = por %p170, %p171
      %p173 = scmp.ne.s32.totalorder %s159, %s160
      %p174 = scmp.eq.s32.totalorder %s21, 1
      %p175 = por %p173, %p174
      %p177 = scmp.ne.s32.totalorder %s160, %s176
      %p178 = scmp.eq.s32.totalorder %s21, 0
      %p179 = por %p177, %p178
      %p180 = scmp.le.s32.totalorder 1, %s15
      %p181 = scmp.lt.s32.totalorder %s15, 3
      %p182 = pnand %p180, %p181
      %p183 = pneg %p182
      // Predicated region
      $region9: #{tpu_custom_call.1} parent=5 // pred_check
        _
      $region10: #{tpu_custom_call.1} parent=5 // pred_check_branch
        %185 = sbr.rel (%p182) target = $region12
      $region11: #{tpu_custom_call.1} parent=5 // pred_region
        %s186 = ssub.s32 %s15, 1
        // Predicated region
        $region13: #{tpu_custom_call.1} parent=11 // pred_check
          %p187 = pneg %p62
        $region14: #{tpu_custom_call.1} parent=11 // pred_check_branch
          %189 = sbr.rel (%p187) target = $region16
        $region15: #{tpu_custom_call.1} parent=11 // pred_region
          _
        $region16: #{tpu_custom_call.1} parent=11 // pred_fallthru
          _
        // Predicated region
        $region17: #{tpu_custom_call.1} parent=11 // pred_check
          %p190 = pneg %p83
        $region18: #{tpu_custom_call.1} parent=11 // pred_check_branch
          %192 = sbr.rel (%p190) target = $region20
        $region19: #{tpu_custom_call.1} parent=11 // pred_region
          _
        $region20: #{tpu_custom_call.1} parent=11 // pred_fallthru
          _
        // Predicated region
        $region21: #{tpu_custom_call.1} parent=11 // pred_check
          %p193 = pneg %p104
        $region22: #{tpu_custom_call.1} parent=11 // pred_check_branch
          %195 = sbr.rel (%p193) target = $region24
        $region23: #{tpu_custom_call.1} parent=11 // pred_region
          _
        $region24: #{tpu_custom_call.1} parent=11 // pred_fallthru
          _
        // Predicated region
        $region25: #{tpu_custom_call.1} parent=11 // pred_check
          %p196 = pneg %p125
        $region26: #{tpu_custom_call.1} parent=11 // pred_check_branch
          %198 = sbr.rel (%p196) target = $region28
        $region27: #{tpu_custom_call.1} parent=11 // pred_region
          _
        $region28: #{tpu_custom_call.1} parent=11 // pred_fallthru
          _
        // Predicated region
        $region29: #{tpu_custom_call.1} parent=11 // pred_check
          %p199 = pneg %p146
        $region30: #{tpu_custom_call.1} parent=11 // pred_check_branch
          %201 = sbr.rel (%p199) target = $region32
        $region31: #{tpu_custom_call.1} parent=11 // pred_region
          _
        $region32: #{tpu_custom_call.1} parent=11 // pred_fallthru
          _
      $region12: #{tpu_custom_call.1} parent=5 // pred_fallthru
        _
      %p202 = scmp.lt.s32.totalorder %s15, 2
      // Predicated region
      $region33: #{tpu_custom_call.1} parent=5 // pred_check
        %p203 = pneg %p202
      $region34: #{tpu_custom_call.1} parent=5 // pred_check_branch
        %205 = sbr.rel (%p203) target = $region36
      $region35: #{tpu_custom_call.1} parent=5 // pred_region
        // Predicated region
        $region37: #{tpu_custom_call.1} parent=35 // pred_check
          %p206 = pneg %p35
        $region38: #{tpu_custom_call.1} parent=35 // pred_check_branch
          %208 = sbr.rel (%p206) target = $region40
        $region39: #{tpu_custom_call.1} parent=35 // pred_region
          %p209 = scmp.lt.s32.totalorder %s15, 1
          %s210 = scalar_select %p209, %s15, 1
          %s211 = smul.addr %s210, 8
          %s212 = scalar_lea.vmem %s0, %s211
        $region40: #{tpu_custom_call.1} parent=35 // pred_fallthru
          _
      $region36: #{tpu_custom_call.1} parent=5 // pred_fallthru
        _
      %p213 = scmp.le.s32.totalorder 1, %s15
      %p214 = scmp.lt.s32.totalorder %s15, 3
      %p215 = pnand %p213, %p214
      %p216 = pneg %p215
      // Predicated region
      $region41: #{tpu_custom_call.1} parent=5 // pred_check
        _
      $region42: #{tpu_custom_call.1} parent=5 // pred_check_branch
        %218 = sbr.rel (%p215) target = $region44
      $region43: #{tpu_custom_call.1} parent=5 // pred_region
        %s219 = ssub.s32 %s15, 1
        %p220 = scmp.lt.s32.totalorder %s20, 1
        %s221 = scalar_select %p220, %s20, 1
        %s222 = smul.addr %s221, 8
        %s223 = scalar_lea.vmem %s0, %s222
        %p224 = pneg %p41
        %p225 = pneg %p38
        %p226 = pneg %p62
        %p227 = pneg %p59
        %p228 = pneg %p83
        %p229 = pneg %p80
        %p230 = pneg %p104
        %p231 = pneg %p101
        %p232 = pneg %p125
        %p233 = pneg %p122
        %p234 = pneg %p146
        %p235 = pneg %p143
        %p236 = pneg %p172
        %p237 = pneg %p169
        %s238 = sand.u32 %s159, 1
        %s239 = scalar_lea.sflag [#allocation4], %s238
        %s240 = sand.u32 %s159, 1
        %s241 = smul.addr %s240, 8
        %s242 = scalar_lea.vmem [#allocation3], %s241
        %p243 = scmp.lt.s32.totalorder %s20, 1
        %s244 = scalar_select %p243, %s20, 1
        %s245 = smul.addr %s244, 8
        %s246 = scalar_lea.vmem %s0, %s245
        %v248 = vld [vmem:[%s246] sm:$0xff]
        %v249 = vld [vmem:[%s1] sm:$0xff]
        %vm250 = vcmask 261120
        %v251 = vsel %vm250, %v248, 0.0
        %252 = vadd.xlane.f32.xlu0 %v251
        %v253 = vpop.xlane.xlu0 %252
        %v254 = vrcp.pop 32.0
        %v255 = vmul.f32 %v253, %v254
        %v256 = vsub.f32 %v248, %v255
        %v257 = vmul.f32 %v256, %v256
        %v258 = vsel %vm250, %v257, 0.0
        %259 = vadd.xlane.f32.xlu0 %v258
        %v260 = vpop.xlane.xlu0 %259
        %v261 = vmul.f32 %v260, %v254
        %v262 = vadd.f32 %v261, 1e-05
        %v263 = vrsqrt.pop %v262
        %v264 = vmul.f32 %v256, %v263
        %v265 = vlaneseq
        %v266 = vshrl.u32 %v265, 7
        %v267 = vsub.s32 0, %v266
        %v268 = vrot.slane %v249, %v267
        %v269 = vmul.f32 %v264, %v268
        %v270 = vlaneseq
        %v271 = vshrl.u32 %v270, 7
        %v272 = vsub.s32 1, %v271
        %v273 = vrot.slane %v249, %v272
        %v274 = vadd.f32 %v269, %v273
        %v275 = vpack.c.bf16 %v274, %v274
        %v276 = vld [vmem:[%s2] sm:$0xf]
        %v277 = vld [vmem:[%s2 + $0x4] sm:$0xf]
        %v278 = vld [vmem:[%s2 + $0x8] sm:$0xf]
        %v279 = vld [vmem:[%s2 + $0xc] sm:$0xf]
        %v284 = vunpack.c.l.b16 %v276
        %v285 = vunpack.c.l.b16 %v277
        %v286 = vunpack.c.l.b16 %v278
        %v287 = vunpack.c.l.b16 %v279
        %v288 = vpack.c.b16 %v285, %v284
        %v289 = vpack.c.b16 %v287, %v286
        %v293 = vsel %vm250, %v275, 0
        %295 = vmatprep.subr.bf16.mxu0 0
        %296 = vmatpush1.bf16.msra.mxu0 %v288
        %297 = vmatprep.subr.bf16.mxu0 0
        %298 = vmatpush1.bf16.msra.mxu0 %v289
        %299 = vmatprep.subr.bf16.mxu0 0
        %300 = vmatpush1.bf16.msra.mxu0 0
        %301 = vmatprep.subr.bf16.mxu0 0
        %302 = vmatpush1.bf16.msra.mxu0 0
        %303 = vmatprep.subr.bf16.mxu0 0
        %304 = vmatpush1.bf16.msra.mxu0 0
        %305 = vmatprep.subr.bf16.mxu0 0
        %306 = vmatpush1.bf16.msra.mxu0 0
        %307 = vmatprep.subr.bf16.mxu0 0
        %308 = vmatpush1.bf16.msra.mxu0 0
        %309 = vmatprep.subr.bf16.mxu0 0
        %310 = vmatpush1.bf16.msra.mxu0 0
        %311 = vmatprep.subr.bf16.mxu0 0
        %312 = vmatpush1.bf16.msra.mxu0 0
        %313 = vmatprep.subr.bf16.mxu0 0
        %314 = vmatpush1.bf16.msra.mxu0 0
        %315 = vmatprep.subr.bf16.mxu0 0
        %316 = vmatpush1.bf16.msra.mxu0 0
        %317 = vmatprep.subr.bf16.mxu0 0
        %318 = vmatpush1.bf16.msra.mxu0 0
        %319 = vmatprep.subr.bf16.mxu0 0
        %320 = vmatpush1.bf16.msra.mxu0 0
        %321 = vmatprep.subr.bf16.mxu0 0
        %322 = vmatpush1.bf16.msra.mxu0 0
        %323 = vmatprep.subr.bf16.mxu0 0
        %324 = vmatpush1.bf16.msra.mxu0 0
        %325 = vmatprep.subr.bf16.mxu0 0
        %326 = vmatpush1.bf16.msra.mxu0 0
        %327 = vmatprep.mubr.bf16.mxu0 0
        %328 = vmatmul.mubr.bf16.gmra.mrb[0].mxu0 %v293
        %v329 = vpop.f32.mrb[0].mxu0
        %v330 = vadd.f32 0.0, %v329
        %v331 = vpop.f32.mrb[0].mxu0
        %v332 = vpop.f32.mrb[0].mxu0
        %v333 = vpop.f32.mrb[0].mxu0
        %334 = vdwg.mxu0
        %v335 = vpack.c.bf16 %v330, %v330
        %337 = vrot.lane.b32.xlu0 %v335, 96
        %v338 = vpop.permute.xlu0 %337
        %vm339 = vcmask 64512
        %v341 = vsel %vm339, %v335, 0
        %v344 = vsel %vm339, %v338, 0
        %346 = vmatprep.subr.bf16.mxu0 0
        %347 = vmatpush1.bf16.xpose.msra.mxu0 %v344
        %348 = vmatprep.subr.bf16.mxu0 0
        %349 = vmatpush1.bf16.xpose.msra.mxu0 0
        %350 = vmatprep.subr.bf16.mxu0 0
        %351 = vmatpush1.bf16.xpose.msra.mxu0 0
        %352 = vmatprep.subr.bf16.mxu0 0
        %353 = vmatpush1.bf16.xpose.msra.mxu0 0
        %354 = vmatprep.subr.bf16.mxu0 0
        %355 = vmatpush1.bf16.xpose.msra.mxu0 0
        %356 = vmatprep.subr.bf16.mxu0 0
        %357 = vmatpush1.bf16.xpose.msra.mxu0 0
        %358 = vmatprep.subr.bf16.mxu0 0
        %359 = vmatpush1.bf16.xpose.msra.mxu0 0
        %360 = vmatprep.subr.bf16.mxu0 0
        %361 = vmatpush1.bf16.xpose.msra.mxu0 0
        %362 = vmatprep.subr.bf16.mxu0 0
        %363 = vmatpush1.bf16.xpose.msra.mxu0 0
        %364 = vmatprep.subr.bf16.mxu0 0
        %365 = vmatpush1.bf16.xpose.msra.mxu0 0
        %366 = vmatprep.subr.bf16.mxu0 0
        %367 = vmatpush1.bf16.xpose.msra.mxu0 0
        %368 = vmatprep.subr.bf16.mxu0 0
        %369 = vmatpush1.bf16.xpose.msra.mxu0 0
        %370 = vmatprep.subr.bf16.mxu0 0
        %371 = vmatpush1.bf16.xpose.msra.mxu0 0
        %372 = vmatprep.subr.bf16.mxu0 0
        %373 = vmatpush1.bf16.xpose.msra.mxu0 0
        %374 = vmatprep.subr.bf16.mxu0 0
        %375 = vmatpush1.bf16.xpose.msra.mxu0 0
        %376 = vmatprep.subr.bf16.mxu0 0
        %377 = vmatpush1.bf16.xpose.msra.mxu0 0
        %378 = vmatprep.mubr.bf16.mxu0 0
        %379 = vmatmul.mubr.bf16.gmra.mrb[0].mxu0 %v341
        %v380 = vpop.f32.mrb[0].mxu0
        %v381 = vadd.f32 0.0, %v380
        %v382 = vpop.f32.mrb[0].mxu0
        %v383 = vpop.f32.mrb[0].mxu0
        %v384 = vpop.f32.mrb[0].mxu0
        %385 = vdwg.mxu0
        %v386 = vmul.f32 %v381, 1.442695
        %v387 = vpow.pop %v386
        %v388 = vsel %vm339, %v387, 0.0
        %389 = vadd.xlane.f32.xlu0 %v388
        %v390 = vpop.xlane.xlu0 %389
        %v391 = vrcp.pop %v390
        %v392 = vmul.f32 %v387, %v391
        %v393 = vpack.c.bf16 %v392, %v392
        %394 = vrot.lane.b32.xlu0 %v335, 64
        %v395 = vpop.permute.xlu0 %394
        %v397 = vsel %vm339, %v393, 0
        %vm399 = vcmask 1043456
        %v401 = vsel %vm399, %v395, 0
        %403 = vmatprep.subr.bf16.mxu0 0
        %404 = vmatpush1.bf16.msra.mxu0 %v401
        %405 = vmatprep.subr.bf16.mxu0 0
        %406 = vmatpush1.bf16.msra.mxu0 0
        %407 = vmatprep.subr.bf16.mxu0 0
        %408 = vmatpush1.bf16.msra.mxu0 0
        %409 = vmatprep.subr.bf16.mxu0 0
        %410 = vmatpush1.bf16.msra.mxu0 0
        %411 = vmatprep.subr.bf16.mxu0 0
        %412 = vmatpush1.bf16.msra.mxu0 0
        %413 = vmatprep.subr.bf16.mxu0 0
        %414 = vmatpush1.bf16.msra.mxu0 0
        %415 = vmatprep.subr.bf16.mxu0 0
        %416 = vmatpush1.bf16.msra.mxu0 0
        %417 = vmatprep.subr.bf16.mxu0 0
        %418 = vmatpush1.bf16.msra.mxu0 0
        %419 = vmatprep.subr.bf16.mxu0 0
        %420 = vmatpush1.bf16.msra.mxu0 0
        %421 = vmatprep.subr.bf16.mxu0 0
        %422 = vmatpush1.bf16.msra.mxu0 0
        %423 = vmatprep.subr.bf16.mxu0 0
        %424 = vmatpush1.bf16.msra.mxu0 0
        %425 = vmatprep.subr.bf16.mxu0 0
        %426 = vmatpush1.bf16.msra.mxu0 0
        %427 = vmatprep.subr.bf16.mxu0 0
        %428 = vmatpush1.bf16.msra.mxu0 0
        %429 = vmatprep.subr.bf16.mxu0 0
        %430 = vmatpush1.bf16.msra.mxu0 0
        %431 = vmatprep.subr.bf16.mxu0 0
        %432 = vmatpush1.bf16.msra.mxu0 0
        %433 = vmatprep.subr.bf16.mxu0 0
        %434 = vmatpush1.bf16.msra.mxu0 0
        %435 = vmatprep.mubr.bf16.mxu0 0
        %436 = vmatmul.mubr.bf16.gmra.mrb[0].mxu0 %v397
        %v437 = vpop.f32.mrb[0].mxu0
        %v438 = vadd.f32 0.0, %v437
        %v439 = vpop.f32.mrb[0].mxu0
        %v440 = vpop.f32.mrb[0].mxu0
        %v441 = vpop.f32.mrb[0].mxu0
        %442 = vdwg.mxu0
        %443 = vst.msk [vmem:[#allocation2] sm:$0xff] %vm339, %v438
        %444 = vrot.lane.b32.xlu0 %v335, 120
        %v445 = vpop.permute.xlu0 %444
        %446 = vrot.lane.b32.xlu0 %v335, 88
        %v447 = vpop.permute.xlu0 %446
        %v449 = vsel %vm339, %v445, 0
        %v452 = vsel %vm339, %v447, 0
        %454 = vmatprep.subr.bf16.mxu0 0
        %455 = vmatpush1.bf16.xpose.msra.mxu0 %v452
        %456 = vmatprep.subr.bf16.mxu0 0
        %457 = vmatpush1.bf16.xpose.msra.mxu0 0
        %458 = vmatprep.subr.bf16.mxu0 0
        %459 = vmatpush1.bf16.xpose.msra.mxu0 0
        %460 = vmatprep.subr.bf16.mxu0 0
        %461 = vmatpush1.bf16.xpose.msra.mxu0 0
        %462 = vmatprep.subr.bf16.mxu0 0
        %463 = vmatpush1.bf16.xpose.msra.mxu0 0
        %464 = vmatprep.subr.bf16.mxu0 0
        %465 = vmatpush1.bf16.xpose.msra.mxu0 0
        %466 = vmatprep.subr.bf16.mxu0 0
        %467 = vmatpush1.bf16.xpose.msra.mxu0 0
        %468 = vmatprep.subr.bf16.mxu0 0
        %469 = vmatpush1.bf16.xpose.msra.mxu0 0
        %470 = vmatprep.subr.bf16.mxu0 0
        %471 = vmatpush1.bf16.xpose.msra.mxu0 0
        %472 = vmatprep.subr.bf16.mxu0 0
        %473 = vmatpush1.bf16.xpose.msra.mxu0 0
        %474 = vmatprep.subr.bf16.mxu0 0
        %475 = vmatpush1.bf16.xpose.msra.mxu0 0
        %476 = vmatprep.subr.bf16.mxu0 0
        %477 = vmatpush1.bf16.xpose.msra.mxu0 0
        %478 = vmatprep.subr.bf16.mxu0 0
        %479 = vmatpush1.bf16.xpose.msra.mxu0 0
        %480 = vmatprep.subr.bf16.mxu0 0
        %481 = vmatpush1.bf16.xpose.msra.mxu0 0
        %482 = vmatprep.subr.bf16.mxu0 0
        %483 = vmatpush1.bf16.xpose.msra.mxu0 0
        %484 = vmatprep.subr.bf16.mxu0 0
        %485 = vmatpush1.bf16.xpose.msra.mxu0 0
        %486 = vmatprep.mubr.bf16.mxu0 0
        %487 = vmatmul.mubr.bf16.gmra.mrb[0].mxu0 %v449
        %v488 = vpop.f32.mrb[0].mxu0
        %v489 = vadd.f32 0.0, %v488
        %v490 = vpop.f32.mrb[0].mxu0
        %v491 = vpop.f32.mrb[0].mxu0
        %v492 = vpop.f32.mrb[0].mxu0
        %493 = vdwg.mxu0
        %v494 = vmul.f32 %v489, 1.442695
        %v495 = vpow.pop %v494
        %v496 = vsel %vm339, %v495, 0.0
        %497 = vadd.xlane.f32.xlu0 %v496
        %v498 = vpop.xlane.xlu0 %497
        %v499 = vrcp.pop %v498
        %v500 = vmul.f32 %v495, %v499
        %v501 = vpack.c.bf16 %v500, %v500
        %502 = vrot.lane.b32.xlu0 %v335, 56
        %v503 = vpop.permute.xlu0 %502
        %v505 = vsel %vm339, %v501, 0
        %v508 = vsel %vm399, %v503, 0
        %510 = vmatprep.subr.bf16.mxu0 0
        %511 = vmatpush1.bf16.msra.mxu0 %v508
        %512 = vmatprep.subr.bf16.mxu0 0
        %513 = vmatpush1.bf16.msra.mxu0 0
        %514 = vmatprep.subr.bf16.mxu0 0
        %515 = vmatpush1.bf16.msra.mxu0 0
        %516 = vmatprep.subr.bf16.mxu0 0
        %517 = vmatpush1.bf16.msra.mxu0 0
        %518 = vmatprep.subr.bf16.mxu0 0
        %519 = vmatpush1.bf16.msra.mxu0 0
        %520 = vmatprep.subr.bf16.mxu0 0
        %521 = vmatpush1.bf16.msra.mxu0 0
        %522 = vmatprep.subr.bf16.mxu0 0
        %523 = vmatpush1.bf16.msra.mxu0 0
        %524 = vmatprep.subr.bf16.mxu0 0
        %525 = vmatpush1.bf16.msra.mxu0 0
        %526 = vmatprep.subr.bf16.mxu0 0
        %527 = vmatpush1.bf16.msra.mxu0 0
        %528 = vmatprep.subr.bf16.mxu0 0
        %529 = vmatpush1.bf16.msra.mxu0 0
        %530 = vmatprep.subr.bf16.mxu0 0
        %531 = vmatpush1.bf16.msra.mxu0 0
        %532 = vmatprep.subr.bf16.mxu0 0
        %533 = vmatpush1.bf16.msra.mxu0 0
        %534 = vmatprep.subr.bf16.mxu0 0
        %535 = vmatpush1.bf16.msra.mxu0 0
        %536 = vmatprep.subr.bf16.mxu0 0
        %537 = vmatpush1.bf16.msra.mxu0 0
        %538 = vmatprep.subr.bf16.mxu0 0
        %539 = vmatpush1.bf16.msra.mxu0 0
        %540 = vmatprep.subr.bf16.mxu0 0
        %541 = vmatpush1.bf16.msra.mxu0 0
        %542 = vmatprep.mubr.bf16.mxu0 0
        %543 = vmatmul.mubr.bf16.gmra.mrb[0].mxu0 %v505
        %v544 = vpop.f32.mrb[0].mxu0
        %v545 = vadd.f32 0.0, %v544
        %v546 = vpop.f32.mrb[0].mxu0
        %v547 = vpop.f32.mrb[0].mxu0
        %v548 = vpop.f32.mrb[0].mxu0
        %549 = vdwg.mxu0
        %551 = vrot.lane.b32.xlu0 %v545, 8
        %v552 = vpop.permute.xlu0 %551
        %vm554 = vcmask 130112
        %555 = vst.msk [vmem:[#allocation2] sm:$0xff] %vm554, %v552
        %556 = vrot.lane.b32.xlu0 %v335, 112
        %v557 = vpop.permute.xlu0 %556
        %558 = vrot.lane.b32.xlu0 %v335, 80
        %v559 = vpop.permute.xlu0 %558
        %v561 = vsel %vm339, %v557, 0
        %v564 = vsel %vm339, %v559, 0
        %566 = vmatprep.subr.bf16.mxu0 0
        %567 = vmatpush1.bf16.xpose.msra.mxu0 %v564
        %568 = vmatprep.subr.bf16.mxu0 0
        %569 = vmatpush1.bf16.xpose.msra.mxu0 0
        %570 = vmatprep.subr.bf16.mxu0 0
        %571 = vmatpush1.bf16.xpose.msra.mxu0 0
        %572 = vmatprep.subr.bf16.mxu0 0
        %573 = vmatpush1.bf16.xpose.msra.mxu0 0
        %574 = vmatprep.subr.bf16.mxu0 0
        %575 = vmatpush1.bf16.xpose.msra.mxu0 0
        %576 = vmatprep.subr.bf16.mxu0 0
        %577 = vmatpush1.bf16.xpose.msra.mxu0 0
        %578 = vmatprep.subr.bf16.mxu0 0
        %579 = vmatpush1.bf16.xpose.msra.mxu0 0
        %580 = vmatprep.subr.bf16.mxu0 0
        %581 = vmatpush1.bf16.xpose.msra.mxu0 0
        %582 = vmatprep.subr.bf16.mxu0 0
        %583 = vmatpush1.bf16.xpose.msra.mxu0 0
        %584 = vmatprep.subr.bf16.mxu0 0
        %585 = vmatpush1.bf16.xpose.msra.mxu0 0
        %586 = vmatprep.subr.bf16.mxu0 0
        %587 = vmatpush1.bf16.xpose.msra.mxu0 0
        %588 = vmatprep.subr.bf16.mxu0 0
        %589 = vmatpush1.bf16.xpose.msra.mxu0 0
        %590 = vmatprep.subr.bf16.mxu0 0
        %591 = vmatpush1.bf16.xpose.msra.mxu0 0
        %592 = vmatprep.subr.bf16.mxu0 0
        %593 = vmatpush1.bf16.xpose.msra.mxu0 0
        %594 = vmatprep.subr.bf16.mxu0 0
        %595 = vmatpush1.bf16.xpose.msra.mxu0 0
        %596 = vmatprep.subr.bf16.mxu0 0
        %597 = vmatpush1.bf16.xpose.msra.mxu0 0
        %598 = vmatprep.mubr.bf16.mxu0 0
        %599 = vmatmul.mubr.bf16.gmra.mrb[0].mxu0 %v561
        %v600 = vpop.f32.mrb[0].mxu0
        %v601 = vadd.f32 0.0, %v600
        %v602 = vpop.f32.mrb[0].mxu0
        %v603 = vpop.f32.mrb[0].mxu0
        %v604 = vpop.f32.mrb[0].mxu0
        %605 = vdwg.mxu0
        %v606 = vmul.f32 %v601, 1.442695
        %v607 = vpow.pop %v606
        %v608 = vsel %vm339, %v607, 0.0
        %609 = vadd.xlane.f32.xlu0 %v608
        %v610 = vpop.xlane.xlu0 %609
        %v611 = vrcp.pop %v610
        %v612 = vmul.f32 %v607, %v611
        %v613 = vpack.c.bf16 %v612, %v612
        %614 = vrot.lane.b32.xlu0 %v335, 48
        %v615 = vpop.permute.xlu0 %614
        %v617 = vsel %vm339, %v613, 0
        %v620 = vsel %vm399, %v615, 0
        %622 = vmatprep.subr.bf16.mxu0 0
        %623 = vmatpush1.bf16.msra.mxu0 %v620
        %624 = vmatprep.subr.bf16.mxu0 0
        %625 = vmatpush1.bf16.msra.mxu0 0
        %626 = vmatprep.subr.bf16.mxu0 0
        %627 = vmatpush1.bf16.msra.mxu0 0
        %628 = vmatprep.subr.bf16.mxu0 0
        %629 = vmatpush1.bf16.msra.mxu0 0
        %630 = vmatprep.subr.bf16.mxu0 0
        %631 = vmatpush1.bf16.msra.mxu0 0
        %632 = vmatprep.subr.bf16.mxu0 0
        %633 = vmatpush1.bf16.msra.mxu0 0
        %634 = vmatprep.subr.bf16.mxu0 0
        %635 = vmatpush1.bf16.msra.mxu0 0
        %636 = vmatprep.subr.bf16.mxu0 0
        %637 = vmatpush1.bf16.msra.mxu0 0
        %638 = vmatprep.subr.bf16.mxu0 0
        %639 = vmatpush1.bf16.msra.mxu0 0
        %640 = vmatprep.subr.bf16.mxu0 0
        %641 = vmatpush1.bf16.msra.mxu0 0
        %642 = vmatprep.subr.bf16.mxu0 0
        %643 = vmatpush1.bf16.msra.mxu0 0
        %644 = vmatprep.subr.bf16.mxu0 0
        %645 = vmatpush1.bf16.msra.mxu0 0
        %646 = vmatprep.subr.bf16.mxu0 0
        %647 = vmatpush1.bf16.msra.mxu0 0
        %648 = vmatprep.subr.bf16.mxu0 0
        %649 = vmatpush1.bf16.msra.mxu0 0
        %650 = vmatprep.subr.bf16.mxu0 0
        %651 = vmatpush1.bf16.msra.mxu0 0
        %652 = vmatprep.subr.bf16.mxu0 0
        %653 = vmatpush1.bf16.msra.mxu0 0
        %654 = vmatprep.mubr.bf16.mxu0 0
        %655 = vmatmul.mubr.bf16.gmra.mrb[0].mxu0 %v617
        %v656 = vpop.f32.mrb[0].mxu0
        %v657 = vadd.f32 0.0, %v656
        %v658 = vpop.f32.mrb[0].mxu0
        %v659 = vpop.f32.mrb[0].mxu0
        %v660 = vpop.f32.mrb[0].mxu0
        %661 = vdwg.mxu0
        %663 = vrot.lane.b32.xlu0 %v657, 16
        %v664 = vpop.permute.xlu0 %663
        %vm666 = vcmask 195712
        %667 = vst.msk [vmem:[#allocation2] sm:$0xff] %vm666, %v664
        %668 = vrot.lane.b32.xlu0 %v335, 104
        %v669 = vpop.permute.xlu0 %668
        %670 = vrot.lane.b32.xlu0 %v335, 72
        %v671 = vpop.permute.xlu0 %670
        %v673 = vsel %vm339, %v669, 0
        %v676 = vsel %vm339, %v671, 0
        %678 = vmatprep.subr.bf16.mxu0 0
        %679 = vmatpush1.bf16.xpose.msra.mxu0 %v676
        %680 = vmatprep.subr.bf16.mxu0 0
        %681 = vmatpush1.bf16.xpose.msra.mxu0 0
        %682 = vmatprep.subr.bf16.mxu0 0
        %683 = vmatpush1.bf16.xpose.msra.mxu0 0
        %684 = vmatprep.subr.bf16.mxu0 0
        %685 = vmatpush1.bf16.xpose.msra.mxu0 0
        %686 = vmatprep.subr.bf16.mxu0 0
        %687 = vmatpush1.bf16.xpose.msra.mxu0 0
        %688 = vmatprep.subr.bf16.mxu0 0
        %689 = vmatpush1.bf16.xpose.msra.mxu0 0
        %690 = vmatprep.subr.bf16.mxu0 0
        %691 = vmatpush1.bf16.xpose.msra.mxu0 0
        %692 = vmatprep.subr.bf16.mxu0 0
        %693 = vmatpush1.bf16.xpose.msra.mxu0 0
        %694 = vmatprep.subr.bf16.mxu0 0
        %695 = vmatpush1.bf16.xpose.msra.mxu0 0
        %696 = vmatprep.subr.bf16.mxu0 0
        %697 = vmatpush1.bf16.xpose.msra.mxu0 0
        %698 = vmatprep.subr.bf16.mxu0 0
        %699 = vmatpush1.bf16.xpose.msra.mxu0 0
        %700 = vmatprep.subr.bf16.mxu0 0
        %701 = vmatpush1.bf16.xpose.msra.mxu0 0
        %702 = vmatprep.subr.bf16.mxu0 0
        %703 = vmatpush1.bf16.xpose.msra.mxu0 0
        %704 = vmatprep.subr.bf16.mxu0 0
        %705 = vmatpush1.bf16.xpose.msra.mxu0 0
        %706 = vmatprep.subr.bf16.mxu0 0
        %707 = vmatpush1.bf16.xpose.msra.mxu0 0
        %708 = vmatprep.subr.bf16.mxu0 0
        %709 = vmatpush1.bf16.xpose.msra.mxu0 0
        %710 = vmatprep.mubr.bf16.mxu0 0
        %711 = vmatmul.mubr.bf16.gmra.mrb[0].mxu0 %v673
        %v712 = vpop.f32.mrb[0].mxu0
        %v713 = vadd.f32 0.0, %v712
        %v714 = vpop.f32.mrb[0].mxu0
        %v715 = vpop.f32.mrb[0].mxu0
        %v716 = vpop.f32.mrb[0].mxu0
        %717 = vdwg.mxu0
        %v718 = vmul.f32 %v713, 1.442695
        %v719 = vpow.pop %v718
        %v720 = vsel %vm339, %v719, 0.0
        %721 = vadd.xlane.f32.xlu0 %v720
        %v722 = vpop.xlane.xlu0 %721
        %v723 = vrcp.pop %v722
        %v724 = vmul.f32 %v719, %v723
        %v725 = vpack.c.bf16 %v724, %v724
        %726 = vrot.lane.b32.xlu0 %v335, 40
        %v727 = vpop.permute.xlu0 %726
        %v729 = vsel %vm339, %v725, 0
        %v732 = vsel %vm399, %v727, 0
        %734 = vmatprep.subr.bf16.mxu0 0
        %735 = vmatpush1.bf16.msra.mxu0 %v732
        %736 = vmatprep.subr.bf16.mxu0 0
        %737 = vmatpush1.bf16.msra.mxu0 0
        %738 = vmatprep.subr.bf16.mxu0 0
        %739 = vmatpush1.bf16.msra.mxu0 0
        %740 = vmatprep.subr.bf16.mxu0 0
        %741 = vmatpush1.bf16.msra.mxu0 0
        %742 = vmatprep.subr.bf16.mxu0 0
        %743 = vmatpush1.bf16.msra.mxu0 0
        %744 = vmatprep.subr.bf16.mxu0 0
        %745 = vmatpush1.bf16.msra.mxu0 0
        %746 = vmatprep.subr.bf16.mxu0 0
        %747 = vmatpush1.bf16.msra.mxu0 0
        %748 = vmatprep.subr.bf16.mxu0 0
        %749 = vmatpush1.bf16.msra.mxu0 0
        %750 = vmatprep.subr.bf16.mxu0 0
        %751 = vmatpush1.bf16.msra.mxu0 0
        %752 = vmatprep.subr.bf16.mxu0 0
        %753 = vmatpush1.bf16.msra.mxu0 0
        %754 = vmatprep.subr.bf16.mxu0 0
        %755 = vmatpush1.bf16.msra.mxu0 0
        %756 = vmatprep.subr.bf16.mxu0 0
        %757 = vmatpush1.bf16.msra.mxu0 0
        %758 = vmatprep.subr.bf16.mxu0 0
        %759 = vmatpush1.bf16.msra.mxu0 0
        %760 = vmatprep.subr.bf16.mxu0 0
        %761 = vmatpush1.bf16.msra.mxu0 0
        %762 = vmatprep.subr.bf16.mxu0 0
        %763 = vmatpush1.bf16.msra.mxu0 0
        %764 = vmatprep.subr.bf16.mxu0 0
        %765 = vmatpush1.bf16.msra.mxu0 0
        %766 = vmatprep.mubr.bf16.mxu0 0
        %767 = vmatmul.mubr.bf16.gmra.mrb[0].mxu0 %v729
        %v768 = vpop.f32.mrb[0].mxu0
        %v769 = vadd.f32 0.0, %v768
        %v770 = vpop.f32.mrb[0].mxu0
        %v771 = vpop.f32.mrb[0].mxu0
        %v772 = vpop.f32.mrb[0].mxu0
        %773 = vdwg.mxu0
        %775 = vrot.lane.b32.xlu0 %v769, 24
        %v776 = vpop.permute.xlu0 %775
        %vm778 = vcmask 261312
        %779 = vst.msk [vmem:[#allocation2] sm:$0xff] %vm778, %v776
        %v780 = vld [vmem:[#allocation2] sm:$0xff]
        %v781 = vpack.c.bf16 %v780, %v780
        %v782 = vld [vmem:[%s3] sm:$0xf]
        %v783 = vld [vmem:[%s3 + $0x4] sm:$0xf]
        %v784 = vld [vmem:[%s3 + $0x8] sm:$0xf]
        %v785 = vld [vmem:[%s3 + $0xc] sm:$0xf]
        %v790 = vunpack.c.l.b16 %v782
        %v791 = vunpack.c.l.b16 %v783
        %v792 = vunpack.c.l.b16 %v784
        %v793 = vunpack.c.l.b16 %v785
        %v794 = vpack.c.b16 %v791, %v790
        %v795 = vpack.c.b16 %v793, %v792
        %v799 = vsel %vm250, %v781, 0
        %801 = vmatprep.subr.bf16.mxu0 0
        %802 = vmatpush1.bf16.msra.mxu0 %v794
        %803 = vmatprep.subr.bf16.mxu0 0
        %804 = vmatpush1.bf16.msra.mxu0 %v795
        %805 = vmatprep.subr.bf16.mxu0 0
        %806 = vmatpush1.bf16.msra.mxu0 0
        %807 = vmatprep.subr.bf16.mxu0 0
        %808 = vmatpush1.bf16.msra.mxu0 0
        %809 = vmatprep.subr.bf16.mxu0 0
        %810 = vmatpush1.bf16.msra.mxu0 0
        %811 = vmatprep.subr.bf16.mxu0 0
        %812 = vmatpush1.bf16.msra.mxu0 0
        %813 = vmatprep.subr.bf16.mxu0 0
        %814 = vmatpush1.bf16.msra.mxu0 0
        %815 = vmatprep.subr.bf16.mxu0 0
        %816 = vmatpush1.bf16.msra.mxu0 0
        %817 = vmatprep.subr.bf16.mxu0 0
        %818 = vmatpush1.bf16.msra.mxu0 0
        %819 = vmatprep.subr.bf16.mxu0 0
        %820 = vmatpush1.bf16.msra.mxu0 0
        %821 = vmatprep.subr.bf16.mxu0 0
        %822 = vmatpush1.bf16.msra.mxu0 0
        %823 = vmatprep.subr.bf16.mxu0 0
        %824 = vmatpush1.bf16.msra.mxu0 0
        %825 = vmatprep.subr.bf16.mxu0 0
        %826 = vmatpush1.bf16.msra.mxu0 0
        %827 = vmatprep.subr.bf16.mxu0 0
        %828 = vmatpush1.bf16.msra.mxu0 0
        %829 = vmatprep.subr.bf16.mxu0 0
        %830 = vmatpush1.bf16.msra.mxu0 0
        %831 = vmatprep.subr.bf16.mxu0 0
        %832 = vmatpush1.bf16.msra.mxu0 0
        %833 = vmatprep.mubr.bf16.mxu0 0
        %834 = vmatmul.mubr.bf16.gmra.mrb[0].mxu0 %v799
        %v835 = vpop.f32.mrb[0].mxu0
        %v836 = vadd.f32 0.0, %v835
        %v837 = vpop.f32.mrb[0].mxu0
        %v838 = vpop.f32.mrb[0].mxu0
        %v839 = vpop.f32.mrb[0].mxu0
        %840 = vdwg.mxu0
        %v841 = vadd.f32 %v248, %v836
        %v842 = vlaneseq
        %v843 = vshrl.u32 %v842, 7
        %v844 = vsub.s32 2, %v843
        %v845 = vrot.slane %v249, %v844
        %v846 = vadd.f32 %v841, %v845
        %v847 = vsel %vm250, %v846, 0.0
        %848 = vadd.xlane.f32.xlu0 %v847
        %v849 = vpop.xlane.xlu0 %848
        %v850 = vmul.f32 %v849, %v254
        %v851 = vsub.f32 %v846, %v850
        %v852 = vmul.f32 %v851, %v851
        %v853 = vsel %vm250, %v852, 0.0
        %854 = vadd.xlane.f32.xlu0 %v853
        %v855 = vpop.xlane.xlu0 %854
        %v856 = vmul.f32 %v855, %v254
        %v857 = vadd.f32 %v856, 1e-05
        %v858 = vrsqrt.pop %v857
        %v859 = vmul.f32 %v851, %v858
        %v860 = vlaneseq
        %v861 = vshrl.u32 %v860, 7
        %v862 = vsub.s32 3, %v861
        %v863 = vrot.slane %v249, %v862
        %v864 = vmul.f32 %v859, %v863
        %v865 = vlaneseq
        %v866 = vshrl.u32 %v865, 7
        %v867 = vsub.s32 4, %v866
        %v868 = vrot.slane %v249, %v867
        %v869 = vadd.f32 %v864, %v868
        %v870 = vpack.c.bf16 %v869, %v869
        %v871 = vld [vmem:[%s4] sm:$0xf]
        %v872 = vld [vmem:[%s4 + $0x4] sm:$0xf]
        %v873 = vld [vmem:[%s4 + $0x8] sm:$0xf]
        %v874 = vld [vmem:[%s4 + $0xc] sm:$0xf]
        %v875 = vlaneseq
        %v876 = vshrl.u32 %v875, 7
        %v877 = vsub.s32 6, %v876
        %v878 = vrot.slane %v249, %v877
        %v883 = vunpack.c.l.b16 %v871
        %v884 = vunpack.c.l.b16 %v872
        %v885 = vunpack.c.l.b16 %v873
        %v886 = vunpack.c.l.b16 %v874
        %v887 = vpack.c.b16 %v884, %v883
        %v888 = vpack.c.b16 %v886, %v885
        %v892 = vsel %vm250, %v870, 0
        %894 = vmatprep.subr.bf16.mxu0 0
        %895 = vmatpush1.bf16.msra.mxu0 %v887
        %896 = vmatprep.subr.bf16.mxu0 0
        %897 = vmatpush1.bf16.msra.mxu0 %v888
        %898 = vmatprep.subr.bf16.mxu0 0
        %899 = vmatpush1.bf16.msra.mxu0 0
        %900 = vmatprep.subr.bf16.mxu0 0
        %901 = vmatpush1.bf16.msra.mxu0 0
        %902 = vmatprep.subr.bf16.mxu0 0
        %903 = vmatpush1.bf16.msra.mxu0 0
        %904 = vmatprep.subr.bf16.mxu0 0
        %905 = vmatpush1.bf16.msra.mxu0 0
        %906 = vmatprep.subr.bf16.mxu0 0
        %907 = vmatpush1.bf16.msra.mxu0 0
        %908 = vmatprep.subr.bf16.mxu0 0
        %909 = vmatpush1.bf16.msra.mxu0 0
        %910 = vmatprep.subr.bf16.mxu0 0
        %911 = vmatpush1.bf16.msra.mxu0 0
        %912 = vmatprep.subr.bf16.mxu0 0
        %913 = vmatpush1.bf16.msra.mxu0 0
        %914 = vmatprep.subr.bf16.mxu0 0
        %915 = vmatpush1.bf16.msra.mxu0 0
        %916 = vmatprep.subr.bf16.mxu0 0
        %917 = vmatpush1.bf16.msra.mxu0 0
        %918 = vmatprep.subr.bf16.mxu0 0
        %919 = vmatpush1.bf16.msra.mxu0 0
        %920 = vmatprep.subr.bf16.mxu0 0
        %921 = vmatpush1.bf16.msra.mxu0 0
        %922 = vmatprep.subr.bf16.mxu0 0
        %923 = vmatpush1.bf16.msra.mxu0 0
        %924 = vmatprep.subr.bf16.mxu0 0
        %925 = vmatpush1.bf16.msra.mxu0 0
        %926 = vmatprep.mubr.bf16.mxu0 0
        %927 = vmatmul.mubr.bf16.gmra.mrb[0].mxu0 %v892
        %v928 = vpop.f32.mrb[0].mxu0
        %v929 = vadd.f32 %v878, %v928
        %v930 = vpop.f32.mrb[0].mxu0
        %v931 = vpop.f32.mrb[0].mxu0
        %v932 = vpop.f32.mrb[0].mxu0
        %933 = vdwg.mxu0
        %v934 = vmul.f32 %v929, 0.5
        %v935 = vmul.f32 %v929, 0.70710677
        %v936 = verf.f32.pop %v935
        %v937 = vadd.f32 %v936, 1.0
        %v938 = vmul.f32 %v934, %v937
        %v939 = vpack.c.bf16 %v938, %v938
        %v940 = vld [vmem:[%s5] sm:$0xf]
        %v941 = vld [vmem:[%s5 + $0x4] sm:$0xf]
        %v942 = vld [vmem:[%s5 + $0x8] sm:$0xf]
        %v943 = vld [vmem:[%s5 + $0xc] sm:$0xf]
        %v944 = vld [vmem:[%s5 + $0x10] sm:$0xf]
        %v945 = vld [vmem:[%s5 + $0x14] sm:$0xf]
        %v946 = vld [vmem:[%s5 + $0x18] sm:$0xf]
        %v947 = vld [vmem:[%s5 + $0x1c] sm:$0xf]
        %v948 = vld [vmem:[%s5 + $0x20] sm:$0xf]
        %v949 = vld [vmem:[%s5 + $0x24] sm:$0xf]
        %v950 = vld [vmem:[%s5 + $0x28] sm:$0xf]
        %v951 = vld [vmem:[%s5 + $0x2c] sm:$0xf]
        %v952 = vld [vmem:[%s5 + $0x30] sm:$0xf]
        %v953 = vld [vmem:[%s5 + $0x34] sm:$0xf]
        %v954 = vld [vmem:[%s5 + $0x38] sm:$0xf]
        %v955 = vld [vmem:[%s5 + $0x3c] sm:$0xf]
        %v956 = vlaneseq
        %v957 = vshrl.u32 %v956, 7
        %v958 = vsub.s32 5, %v957
        %v959 = vrot.slane %v249, %v958
        %v976 = vunpack.c.l.b16 %v940
        %v977 = vunpack.c.l.b16 %v941
        %v978 = vunpack.c.l.b16 %v942
        %v979 = vunpack.c.l.b16 %v943
        %v980 = vunpack.c.l.b16 %v944
        %v981 = vunpack.c.l.b16 %v945
        %v982 = vunpack.c.l.b16 %v946
        %v983 = vunpack.c.l.b16 %v947
        %v984 = vunpack.c.l.b16 %v948
        %v985 = vunpack.c.l.b16 %v949
        %v986 = vunpack.c.l.b16 %v950
        %v987 = vunpack.c.l.b16 %v951
        %v988 = vunpack.c.l.b16 %v952
        %v989 = vunpack.c.l.b16 %v953
        %v990 = vunpack.c.l.b16 %v954
        %v991 = vunpack.c.l.b16 %v955
        %v992 = vpack.c.b16 %v977, %v976
        %v993 = vpack.c.b16 %v979, %v978
        %v994 = vpack.c.b16 %v981, %v980
        %v995 = vpack.c.b16 %v983, %v982
        %v996 = vpack.c.b16 %v985, %v984
        %v997 = vpack.c.b16 %v987, %v986
        %v998 = vpack.c.b16 %v989, %v988
        %v999 = vpack.c.b16 %v991, %v990
        %1008 = vmatprep.subr.bf16.mxu0 0
        %1009 = vmatpush1.bf16.msra.mxu0 %v992
        %1010 = vmatprep.subr.bf16.mxu0 0
        %1011 = vmatpush1.bf16.msra.mxu0 %v993
        %1012 = vmatprep.subr.bf16.mxu0 0
        %1013 = vmatpush1.bf16.msra.mxu0 %v994
        %1014 = vmatprep.subr.bf16.mxu0 0
        %1015 = vmatpush1.bf16.msra.mxu0 %v995
        %1016 = vmatprep.subr.bf16.mxu0 0
        %1017 = vmatpush1.bf16.msra.mxu0 %v996
        %1018 = vmatprep.subr.bf16.mxu0 0
        %1019 = vmatpush1.bf16.msra.mxu0 %v997
        %1020 = vmatprep.subr.bf16.mxu0 0
        %1021 = vmatpush1.bf16.msra.mxu0 %v998
        %1022 = vmatprep.subr.bf16.mxu0 0
        %1023 = vmatpush1.bf16.msra.mxu0 %v999
        %1024 = vmatprep.subr.bf16.mxu0 0
        %1025 = vmatpush1.bf16.msra.mxu0 0
        %1026 = vmatprep.subr.bf16.mxu0 0
        %1027 = vmatpush1.bf16.msra.mxu0 0
        %1028 = vmatprep.subr.bf16.mxu0 0
        %1029 = vmatpush1.bf16.msra.mxu0 0
        %1030 = vmatprep.subr.bf16.mxu0 0
        %1031 = vmatpush1.bf16.msra.mxu0 0
        %1032 = vmatprep.subr.bf16.mxu0 0
        %1033 = vmatpush1.bf16.msra.mxu0 0
        %1034 = vmatprep.subr.bf16.mxu0 0
        %1035 = vmatpush1.bf16.msra.mxu0 0
        %1036 = vmatprep.subr.bf16.mxu0 0
        %1037 = vmatpush1.bf16.msra.mxu0 0
        %1038 = vmatprep.subr.bf16.mxu0 0
        %1039 = vmatpush1.bf16.msra.mxu0 0
        %1040 = vmatprep.mubr.bf16.mxu0 0
        %1041 = vmatmul.mubr.bf16.gmra.mrb[0].mxu0 %v939
        %v1042 = vpop.f32.mrb[0].mxu0
        %v1043 = vadd.f32 %v959, %v1042
        %v1044 = vpop.f32.mrb[0].mxu0
        %v1045 = vpop.f32.mrb[0].mxu0
        %v1046 = vpop.f32.mrb[0].mxu0
        %1047 = vdwg.mxu0
        %v1048 = vadd.f32 %v846, %v1043
        %1049 = vst.msk [vmem:[%s242] sm:$0xff] %vm250, %v1048
        %s1050 = sand.u32 %s159, 1
        %s1051 = scalar_lea.sflag [#allocation4], %s1050
        %s1052 = sand.u32 %s159, 1
        %s1053 = smul.addr %s1052, 8
        %s1054 = scalar_lea.vmem [#allocation3], %s1053
        // Predicated region
        $region45: #{tpu_custom_call.1} parent=43 // pred_check
          %p1055 = pneg %p169
        $region46: #{tpu_custom_call.1} parent=43 // pred_check_branch
          %1057 = sbr.rel (%p1055) target = $region48
        $region47: #{tpu_custom_call.1} parent=43 // pred_region
          %s1059 = ssub.s32 128, 128
          %1060 = vsyncadd %s1051, %s1059
          %s1061 = smul.addr %s20, 128
          %s1062 = scalar_lea.hbm %s6, %s1061
          %s1064 = sshll.u32 %s1054, 4
          %s1065 = int_to_ptr.vmem [resolvable:$true] %s1064
          %1067 = dma.vmem_to_hbm [thread:$0]  %s1065, 128, %s1062, %s1051
        $region48: #{tpu_custom_call.1} parent=43 // pred_fallthru
          _
      $region44: #{tpu_custom_call.1} parent=5 // pred_fallthru
        _
      %p1068 = scmp.le.s32.totalorder 2, %s15
      // Predicated region
      $region49: #{tpu_custom_call.1} parent=5 // pred_check
        %p1069 = pneg %p1068
      $region50: #{tpu_custom_call.1} parent=5 // pred_check_branch
        %1071 = sbr.rel (%p1069) target = $region52
      $region51: #{tpu_custom_call.1} parent=5 // pred_region
        %s1072 = ssub.s32 %s15, 2
        // Predicated region
        $region53: #{tpu_custom_call.1} parent=51 // pred_check
          %p1073 = pneg %p175
        $region54: #{tpu_custom_call.1} parent=51 // pred_check_branch
          %1075 = sbr.rel (%p1073) target = $region56
        $region55: #{tpu_custom_call.1} parent=51 // pred_region
          %s1076 = sand.u32 %s160, 1
          %s1077 = scalar_lea.sflag [#allocation4], %s1076
          %s1078 = sand.u32 %s160, 1
          %s1079 = smul.addr %s1078, 8
          %s1080 = scalar_lea.vmem [#allocation3], %s1079
          %1081 = dma.done %s1077, 128
        $region56: #{tpu_custom_call.1} parent=51 // pred_fallthru
          _
      $region52: #{tpu_custom_call.1} parent=5 // pred_fallthru
        _
    $region6: #{tpu_custom_call.1} parent=1 // loop_footer
      %s19 = sadd.s32 1, %s15
    $region7: #{tpu_custom_call.1} parent=1 // loop_footer_branch
      %14 = sbr.rel target = $region3
    $region8: #{tpu_custom_call.1} parent=1 // loop_exit
      _
    %1082 = vsyncpa [#allocation4], 1
    %s1083 = scalar_lea.sflag [#allocation4], 1
    %1084 = vsyncpa %s1083, 1

</llo_original>
